<compile_context>
chip_gen: v5e
topology: v5e:2x2
jax: 0.10.0
libtpu: 0.0.40
codegen_flags: <defaults>
</compile_context>

<pallas_src>
import jax
import jax.numpy as jnp
from jax import lax
from jax.experimental import pallas as pl
from jax.experimental.pallas import tpu as pltpu


# ----------------------------------------------------------------------------
# Pallas kernel: one (direction, time-chunk) grid step of a GRU layer.
# ----------------------------------------------------------------------------
def _make_bigru_chunk_kernel(ndir: int, s_tile: int):
    def kernel(gi_ref, whh_ref, bhn_ref, out_ref, h_scr):
        # gi_ref : (S_TILE, B, 3H) x @ W_ih + b_ih + [b_hr, b_hz, 0] (this chunk)
        # whh_ref: (H, 3H)         recurrent weights (transposed), this direction
        # bhn_ref: (1, H)          n-gate recurrent bias, this direction
        # out_ref: (S_TILE, B, H)  hidden states for this chunk (time order)
        # h_scr  : (B, H)          persistent hidden-state carry across chunks
        d = pl.program_id(0)
        t = pl.program_id(1)
        B, H = h_scr.shape

        @pl.when(t == 0)
        def _():                                   # init_hidden is zeros
            h_scr[...] = jnp.zeros_like(h_scr)

        # Hoisted out of the time loop: weights + pre-broadcast n-gate bias.
        whh = whh_ref[...]
        bhn = jnp.broadcast_to(bhn_ref[...].astype(jnp.float32), (B, H))

        def run_chunk(reverse: bool):
            h = h_scr[...]                         # carried in vregs inside chunk
            steps = range(s_tile - 1, -1, -1) if reverse else range(s_tile)
            for j in steps:                        # static indices; s_tile small,
                                                   # time grid bounds live ranges
                gi = gi_ref[j].astype(jnp.float32)               # (B, 3H)
                gh = jnp.dot(h.astype(whh.dtype), whh,
                             preferred_element_type=jnp.float32)  # (B, 3H)
                # PyTorch gate order r, z, n; one contiguous sigmoid for r|z.
                rz = jax.nn.sigmoid(gi[:, :2 * H] + gh[:, :2 * H])
                r = rz[:, :H]
                z = rz[:, H:]
                n = jnp.tanh(gi[:, 2 * H:] + r * (gh[:, 2 * H:] + bhn))
                h = (1.0 - z) * n + z * h
                out_ref[j] = h.astype(out_ref.dtype)
            h_scr[...] = h

        @pl.when(d == 0)
        def _():
            run_chunk(reverse=False)

        if ndir == 2:
            @pl.when(d == 1)
            def _():
                run_chunk(reverse=True)

    return kernel


def gru_layer(x_psbh, w_ih, w_hh, b_ih, b_hh, *, num_units,
              s_tile=None, mxu_dtype=jnp.float32):
    """One (bi)directional GRU layer.

    x_psbh: (P, S, B, Hin)      previous-layer output, direction-major (P=1 layer 0)
    w_ih  : (ndir, P, Hin, 3H)  input weights (transposed), split over P
    w_hh  : (ndir, H, 3H)       recurrent weights (transposed)
    b_ih  : (ndir, 3H);  b_hh: (ndir, 3H)
    Returns (ndir, S, B, H) hidden states in original time order.
    """
    P, S, B, _ = x_psbh.shape
    H = num_units
    ndir = w_hh.shape[0]
    if s_tile is None:
        s_tile = min(S, 8)
    assert S % s_tile == 0, "TODO(synk): pad/mask ragged time chunks"
    T = S // s_tile

    # Hoisted input projection (one big matmul per layer) with the r/z parts of
    # b_hh folded in.  Contracting over (P, Hin) consumes the previous layer's
    # (ndir, S, B, H) output directly -> no interleave/transpose between layers.
    b_fold = b_ih.at[:, :2 * H].add(b_hh[:, :2 * H])
    gi = jnp.einsum("psbh,nphk->nsbk", x_psbh, w_ih) + b_fold[:, None, None, :]
    gi = gi.astype(mxu_dtype)        # bf16 halves GI VMEM/HBM traffic at real sizes
    whh = w_hh.astype(mxu_dtype)
    bhn = b_hh[:, None, 2 * H:]      # (ndir, 1, H), stays f32

    # Forward direction walks time chunks 0..T-1, reverse walks T-1..0: the
    # reversal is pure DMA-side bookkeeping in the index_maps.
    def chunk_idx(d, t):
        return t + d * (T - 1 - 2 * t)

    kernel = _make_bigru_chunk_kernel(ndir, s_tile)
    return pl.pallas_call(
        kernel,
        out_shape=jax.ShapeDtypeStruct((ndir, S, B, H), jnp.float32),
        grid_spec=pltpu.PrefetchScalarGridSpec(
            num_scalar_prefetch=0,
            grid=(ndir, T),
            in_specs=[
                pl.BlockSpec((pl.Squeezed(), s_tile, B, 3 * H),
                             lambda d, t: (d, chunk_idx(d, t), 0, 0)),
                pl.BlockSpec((pl.Squeezed(), H, 3 * H), lambda d, t: (d, 0, 0)),
                pl.BlockSpec((pl.Squeezed(), 1, H), lambda d, t: (d, 0, 0)),
            ],
            out_specs=pl.BlockSpec((pl.Squeezed(), s_tile, B, H),
                                   lambda d, t: (d, chunk_idx(d, t), 0, 0)),
            scratch_shapes=[pltpu.VMEM((B, H), jnp.float32)],
        ),
        compiler_params=pltpu.CompilerParams(
            # directions independent -> one per TensorCore on v7x;
            # time chunks carry the hidden state -> "arbitrary".
            dimension_semantics=("parallel", "arbitrary")),
    )(gi, whh, bhn)


# ----------------------------------------------------------------------------
# EncoderRNN forward (glue in plain JAX; per-layer bi-GRU runs in Pallas)
# ----------------------------------------------------------------------------
def make_params(key, input_size, num_units, nlayers, bidir):
    """Weights ~ N(0, 0.1) (reset_parameters-style); small random biases so the
    bias-folding path is exercised.  Stored transposed ([in, 3H]) and stacked
    over a leading direction axis."""
    ndir = 2 if bidir else 1
    params = []
    for i in range(nlayers):
        in_size = input_size if i == 0 else num_units * ndir
        key, k1, k2, k3, k4 = jax.random.split(key, 5)
        w_ih = 0.1 * jax.random.normal(k1, (ndir, in_size, 3 * num_units), jnp.float32)
        w_hh = 0.1 * jax.random.normal(k2, (ndir, num_units, 3 * num_units), jnp.float32)
        b_ih = 0.1 * jax.random.normal(k3, (ndir, 3 * num_units), jnp.float32)
        b_hh = 0.1 * jax.random.normal(k4, (ndir, 3 * num_units), jnp.float32)
        params.append((w_ih, w_hh, b_ih, b_hh))
    return params


def encoder_rnn_forward(x_bsd, params, *, num_units, bidir, concat, return_last,
                        mxu_dtype=jnp.float32):
    """x_bsd: (B, S, D) batch-first, like the PyTorch module."""
    B, S, _ = x_bsd.shape
    ndir = 2 if bidir else 1
    H = num_units
    # batch-first -> time-major exactly once; add the direction-major axis (P=1).
    x = jnp.transpose(x_bsd, (1, 0, 2))[None]                      # (1, S, B, D)
    layer_outs = []
    for (w_ih, w_hh, b_ih, b_hh) in params:
        # LockedDropout -> identity (inference)
        P = x.shape[0]
        w_ih_r = w_ih.reshape(ndir, P, w_ih.shape[1] // P, 3 * H)
        y = gru_layer(x, w_ih_r, w_hh, b_ih, b_hh, num_units=H,
                      mxu_dtype=mxu_dtype)                          # (ndir, S, B, H)
        layer_outs.append(y)
        x = y                                                       # next layer input

    if return_last:
        pieces = []
        for y in layer_outs:
            last = [y[0, -1]] + ([y[1, 0]] if ndir == 2 else [])    # (B, H) each
            pieces.append(jnp.concatenate(last, axis=-1))
        return jnp.concatenate(pieces, -1) if concat else pieces[-1]

    if concat:
        y_all = jnp.stack(layer_outs, axis=0)            # (L, ndir, S, B, H)
        out = jnp.transpose(y_all, (3, 2, 0, 1, 4))      # (B, S, L, ndir, H) - once
        return out.reshape(B, S, -1)
    y = layer_outs[-1]
    return jnp.transpose(y, (2, 1, 0, 3)).reshape(B, S, ndir * H)


# ----------------------------------------------------------------------------
# Pure-JAX reference (lax.scan) for a correctness check
# ----------------------------------------------------------------------------
def gru_direction_ref(x_sbd, w_ih, w_hh, b_ih, b_hh, *, reverse):
    H = w_hh.shape[0]
    B = x_sbd.shape[1]
    h0 = jnp.zeros((B, H), jnp.float32)
    xs = x_sbd[::-1] if reverse else x_sbd

    def step(h, x_t):
        gi = x_t @ w_ih + b_ih
        gh = h @ w_hh + b_hh
        r = jax.nn.sigmoid(gi[:, :H] + gh[:, :H])
        z = jax.nn.sigmoid(gi[:, H:2 * H] + gh[:, H:2 * H])
        n = jnp.tanh(gi[:, 2 * H:] + r * gh[:, 2 * H:])
        h_new = (1.0 - z) * n + z * h
        return h_new, h_new

    _, ys = lax.scan(step, h0, xs)
    return ys[::-1] if reverse else ys


def encoder_rnn_forward_ref(x_bsd, params, *, num_units, bidir, concat, return_last):
    output = x_bsd
    outputs = []
    for (w_ih, w_hh, b_ih, b_hh) in params:
        x_sbd = jnp.transpose(output, (1, 0, 2))
        ndir = w_ih.shape[0]
        dir_outs, last_h = [], []
        for d in range(ndir):
            rev = (d == 1)
            y = gru_direction_ref(x_sbd, w_ih[d], w_hh[d], b_ih[d], b_hh[d], reverse=rev)
            dir_outs.append(y)
            last_h.append(y[0] if rev else y[-1])
        out_sbh = jnp.concatenate(dir_outs, axis=-1) if ndir == 2 else dir_outs[0]
        output = jnp.transpose(out_sbh, (1, 0, 2))
        outputs.append(jnp.concatenate(last_h, axis=-1) if return_last else output)
    return jnp.concatenate(outputs, axis=-1) if concat else outputs[-1]


# ----------------------------------------------------------------------------
if __name__ == "__main__":
    # Module config
    INPUT_SIZE = 16
    NUM_UNITS = 32
    NLAYERS = 2
    BIDIR = True
    CONCAT = True
    RETURN_LAST = False

    # Small deterministic inputs
    B, S = 2, 8
    key = jax.random.PRNGKey(0)
    key, kx = jax.random.split(key)
    x = jax.random.normal(kx, (B, S, INPUT_SIZE), jnp.float32)
    params = make_params(key, INPUT_SIZE, NUM_UNITS, NLAYERS, BIDIR)

    ref = encoder_rnn_forward_ref(x, params, num_units=NUM_UNITS, bidir=BIDIR,
                                  concat=CONCAT, return_last=RETURN_LAST)
    ref = jax.block_until_ready(ref)

    # f32 MXU-operand path: tight check against the pure-JAX reference.
    out = encoder_rnn_forward(x, params, num_units=NUM_UNITS, bidir=BIDIR,
                              concat=CONCAT, return_last=RETURN_LAST)
    out = jax.block_until_ready(out)
    assert out.shape == (B, S, NLAYERS * (2 if BIDIR else 1) * NUM_UNITS), out.shape
    err = float(jnp.max(jnp.abs(out - ref)))
    assert err < 1e-4, f"f32 max abs err {err}"

    # bf16 MXU-operand path (f32 accumulation + f32 gate math), per perf review.
    out_bf16 = encoder_rnn_forward(x, params, num_units=NUM_UNITS, bidir=BIDIR,
                                   concat=CONCAT, return_last=RETURN_LAST,
                                   mxu_dtype=jnp.bfloat16)
    out_bf16 = jax.block_until_ready(out_bf16)
    err_bf16 = float(jnp.max(jnp.abs(out_bf16 - ref)))
    assert err_bf16 < 5e-2, f"bf16 max abs err {err_bf16}"

    print("KERNEL_OK")
</pallas_src>

<mosaic_0001>
module attributes {stable_mosaic.version = 11 : i64} {
  func.func @kernel(%arg0: i32, %arg1: i32, %arg2: memref<1x8x2x96xf32, #tpu.memory_space<vmem>>, %arg3: memref<1x32x96xf32, #tpu.memory_space<vmem>>, %arg4: memref<1x1x32xf32, #tpu.memory_space<vmem>>, %arg5: memref<1x8x2x32xf32, #tpu.memory_space<vmem>>, %arg6: memref<2x32xf32, #tpu.memory_space<vmem>>) attributes {dimension_semantics = [#tpu.dimension_semantics<parallel>, #tpu.dimension_semantics<arbitrary>], iteration_bounds = array<i64: 2, 1>, scalar_prefetch = 0 : i64, scratch_operands = 1 : i64, tpu.core_type = #tpu.core_type<tc>, window_params = [{transform_indices = @transform_0, window_bounds = array<i64: 1, 8, 2, 96>}, {transform_indices = @transform_1, window_bounds = array<i64: 1, 32, 96>}, {transform_indices = @transform_2, window_bounds = array<i64: 1, 1, 32>}, {transform_indices = @transform_3, window_bounds = array<i64: 1, 8, 2, 32>}]} {
    %c0_i32 = arith.constant 0 : i32
    %0 = arith.cmpi eq, %arg1, %c0_i32 : i32
    %1 = arith.extui %0 : i1 to i32
    %c0_i32_0 = arith.constant 0 : i32
    %2 = arith.cmpi ne, %1, %c0_i32_0 : i32
    scf.if %2 {
      %cst = arith.constant 0.000000e+00 : f32
      %15 = vector.broadcast %cst : f32 to vector<2x32xf32>
      %c0_9 = arith.constant 0 : index
      %c0_10 = arith.constant 0 : index
      %16 = vector.load %arg6[%c0_9, %c0_10] : memref<2x32xf32, #tpu.memory_space<vmem>>, vector<2x32xf32>
      tpu.vector_store %arg6[%c0_9, %c0_10], %15 {strides = array<i32>} : memref<2x32xf32, #tpu.memory_space<vmem>>, vector<2x32xf32>,
    } else {
    }
    %c0 = arith.constant 0 : index
    %c0_1 = arith.constant 0 : index
    %c0_2 = arith.constant 0 : index
    %3 = vector.load %arg3[%c0, %c0_1, %c0_2] : memref<1x32x96xf32, #tpu.memory_space<vmem>>, vector<1x32x96xf32>
    %4 = vector.shape_cast %3 : vector<1x32x96xf32> to vector<32x96xf32>
    %c0_3 = arith.constant 0 : index
    %c0_4 = arith.constant 0 : index
    %c0_5 = arith.constant 0 : index
    %5 = vector.load %arg4[%c0_3, %c0_4, %c0_5] : memref<1x1x32xf32, #tpu.memory_space<vmem>>, vector<1x1x32xf32>
    %6 = vector.shape_cast %5 : vector<1x1x32xf32> to vector<1x32xf32>
    %7 = vector.shape_cast %6 : vector<1x32xf32> to vector<1x32xf32>
    %8 = vector.broadcast %7 : vector<1x32xf32> to vector<2x32xf32>
    %c0_i32_6 = arith.constant 0 : i32
    %9 = arith.cmpi eq, %arg0, %c0_i32_6 : i32
    %10 = arith.extui %9 : i1 to i32
    %c0_i32_7 = arith.constant 0 : i32
    %11 = arith.cmpi ne, %10, %c0_i32_7 : i32
    scf.if %11 {
      %c0_9 = arith.constant 0 : index
      %c0_10 = arith.constant 0 : index
      %15 = vector.load %arg6[%c0_9, %c0_10] : memref<2x32xf32, #tpu.memory_space<vmem>>, vector<2x32xf32>
      %c0_11 = arith.constant 0 : index
      %c0_12 = arith.constant 0 : index
      %c0_13 = arith.constant 0 : index
      %c0_14 = arith.constant 0 : index
      %16 = vector.load %arg2[%c0_11, %c0_12, %c0_13, %c0_14] : memref<1x8x2x96xf32, #tpu.memory_space<vmem>>, vector<1x1x2x96xf32>
      %17 = vector.shape_cast %16 : vector<1x1x2x96xf32> to vector<2x96xf32>
      %cst = arith.constant dense<0.000000e+00> : vector<2x96xf32>
      %18 = tpu.matmul %15, %4, %cst {dimension_numbers = #tpu.dot_dimension_numbers<[1], [0], [0], [1], [0, 0, 1, 1], [], []>} : vector<2x32xf32>, vector<32x96xf32>, vector<2x96xf32> -> vector<2x96xf32>
      %19 = vector.extract_strided_slice %17 {offsets = [0, 0], sizes = [2, 64], strides = [1, 1]} : vector<2x96xf32> to vector<2x64xf32>
      %20 = vector.extract_strided_slice %18 {offsets = [0, 0], sizes = [2, 64], strides = [1, 1]} : vector<2x96xf32> to vector<2x64xf32>
      %21 = arith.addf %19, %20 : vector<2x64xf32>
      %22 = arith.negf %21 : vector<2x64xf32>
      %23 = math.exp %22 : vector<2x64xf32>
      %cst_15 = arith.constant 1.000000e+00 : f32
      %24 = vector.broadcast %cst_15 : f32 to vector<2x64xf32>
      %25 = arith.addf %24, %23 : vector<2x64xf32>
      %26 = arith.divf %24, %25 : vector<2x64xf32>
      %27 = vector.extract_strided_slice %26 {offsets = [0, 0], sizes = [2, 32], strides = [1, 1]} : vector<2x64xf32> to vector<2x32xf32>
      %28 = vector.extract_strided_slice %26 {offsets = [0, 32], sizes = [2, 32], strides = [1, 1]} : vector<2x64xf32> to vector<2x32xf32>
      %29 = vector.extract_strided_slice %17 {offsets = [0, 64], sizes = [2, 32], strides = [1, 1]} : vector<2x96xf32> to vector<2x32xf32>
      %30 = vector.extract_strided_slice %18 {offsets = [0, 64], sizes = [2, 32], strides = [1, 1]} : vector<2x96xf32> to vector<2x32xf32>
      %31 = arith.addf %30, %8 : vector<2x32xf32>
      %32 = arith.mulf %27, %31 : vector<2x32xf32>
      %33 = arith.addf %29, %32 : vector<2x32xf32>
      %34 = math.tanh %33 : vector<2x32xf32>
      %cst_16 = arith.constant 1.000000e+00 : f32
      %35 = vector.broadcast %cst_16 : f32 to vector<2x32xf32>
      %36 = arith.subf %35, %28 : vector<2x32xf32>
      %37 = arith.mulf %36, %34 : vector<2x32xf32>
      %38 = arith.mulf %28, %15 : vector<2x32xf32>
      %39 = arith.addf %37, %38 : vector<2x32xf32>
      %c0_17 = arith.constant 0 : index
      %c0_18 = arith.constant 0 : index
      %c0_19 = arith.constant 0 : index
      %c0_20 = arith.constant 0 : index
      %40 = vector.load %arg5[%c0_17, %c0_18, %c0_19, %c0_20] : memref<1x8x2x32xf32, #tpu.memory_space<vmem>>, vector<1x1x2x32xf32>
      %41 = vector.shape_cast %40 : vector<1x1x2x32xf32> to vector<2x32xf32>
      %42 = vector.shape_cast %39 : vector<2x32xf32> to vector<1x1x2x32xf32>
      tpu.vector_store %arg5[%c0_17, %c0_18, %c0_19, %c0_20], %42 {strides = array<i32>} : memref<1x8x2x32xf32, #tpu.memory_space<vmem>>, vector<1x1x2x32xf32>,
      %c0_21 = arith.constant 0 : index
      %c1 = arith.constant 1 : index
      %c0_22 = arith.constant 0 : index
      %c0_23 = arith.constant 0 : index
      %43 = vector.load %arg2[%c0_21, %c1, %c0_22, %c0_23] : memref<1x8x2x96xf32, #tpu.memory_space<vmem>>, vector<1x1x2x96xf32>
      %44 = vector.shape_cast %43 : vector<1x1x2x96xf32> to vector<2x96xf32>
      %cst_24 = arith.constant dense<0.000000e+00> : vector<2x96xf32>
      %45 = tpu.matmul %39, %4, %cst_24 {dimension_numbers = #tpu.dot_dimension_numbers<[1], [0], [0], [1], [0, 0, 1, 1], [], []>} : vector<2x32xf32>, vector<32x96xf32>, vector<2x96xf32> -> vector<2x96xf32>
      %46 = vector.extract_strided_slice %44 {offsets = [0, 0], sizes = [2, 64], strides = [1, 1]} : vector<2x96xf32> to vector<2x64xf32>
      %47 = vector.extract_strided_slice %45 {offsets = [0, 0], sizes = [2, 64], strides = [1, 1]} : vector<2x96xf32> to vector<2x64xf32>
      %48 = arith.addf %46, %47 : vector<2x64xf32>
      %49 = arith.negf %48 : vector<2x64xf32>
      %50 = math.exp %49 : vector<2x64xf32>
      %cst_25 = arith.constant 1.000000e+00 : f32
      %51 = vector.broadcast %cst_25 : f32 to vector<2x64xf32>
      %52 = arith.addf %51, %50 : vector<2x64xf32>
      %53 = arith.divf %51, %52 : vector<2x64xf32>
      %54 = vector.extract_strided_slice %53 {offsets = [0, 0], sizes = [2, 32], strides = [1, 1]} : vector<2x64xf32> to vector<2x32xf32>
      %55 = vector.extract_strided_slice %53 {offsets = [0, 32], sizes = [2, 32], strides = [1, 1]} : vector<2x64xf32> to vector<2x32xf32>
      %56 = vector.extract_strided_slice %44 {offsets = [0, 64], sizes = [2, 32], strides = [1, 1]} : vector<2x96xf32> to vector<2x32xf32>
      %57 = vector.extract_strided_slice %45 {offsets = [0, 64], sizes = [2, 32], strides = [1, 1]} : vector<2x96xf32> to vector<2x32xf32>
      %58 = arith.addf %57, %8 : vector<2x32xf32>
      %59 = arith.mulf %54, %58 : vector<2x32xf32>
      %60 = arith.addf %56, %59 : vector<2x32xf32>
      %61 = math.tanh %60 : vector<2x32xf32>
      %cst_26 = arith.constant 1.000000e+00 : f32
      %62 = vector.broadcast %cst_26 : f32 to vector<2x32xf32>
      %63 = arith.subf %62, %55 : vector<2x32xf32>
      %64 = arith.mulf %63, %61 : vector<2x32xf32>
      %65 = arith.mulf %55, %39 : vector<2x32xf32>
      %66 = arith.addf %64, %65 : vector<2x32xf32>
      %c0_27 = arith.constant 0 : index
      %c1_28 = arith.constant 1 : index
      %c0_29 = arith.constant 0 : index
      %c0_30 = arith.constant 0 : index
      %67 = vector.load %arg5[%c0_27, %c1_28, %c0_29, %c0_30] : memref<1x8x2x32xf32, #tpu.memory_space<vmem>>, vector<1x1x2x32xf32>
      %68 = vector.shape_cast %67 : vector<1x1x2x32xf32> to vector<2x32xf32>
      %69 = vector.shape_cast %66 : vector<2x32xf32> to vector<1x1x2x32xf32>
      tpu.vector_store %arg5[%c0_27, %c1_28, %c0_29, %c0_30], %69 {strides = array<i32>} : memref<1x8x2x32xf32, #tpu.memory_space<vmem>>, vector<1x1x2x32xf32>,
      %c0_31 = arith.constant 0 : index
      %c2 = arith.constant 2 : index
      %c0_32 = arith.constant 0 : index
      %c0_33 = arith.constant 0 : index
      %70 = vector.load %arg2[%c0_31, %c2, %c0_32, %c0_33] : memref<1x8x2x96xf32, #tpu.memory_space<vmem>>, vector<1x1x2x96xf32>
      %71 = vector.shape_cast %70 : vector<1x1x2x96xf32> to vector<2x96xf32>
      %cst_34 = arith.constant dense<0.000000e+00> : vector<2x96xf32>
      %72 = tpu.matmul %66, %4, %cst_34 {dimension_numbers = #tpu.dot_dimension_numbers<[1], [0], [0], [1], [0, 0, 1, 1], [], []>} : vector<2x32xf32>, vector<32x96xf32>, vector<2x96xf32> -> vector<2x96xf32>
      %73 = vector.extract_strided_slice %71 {offsets = [0, 0], sizes = [2, 64], strides = [1, 1]} : vector<2x96xf32> to vector<2x64xf32>
      %74 = vector.extract_strided_slice %72 {offsets = [0, 0], sizes = [2, 64], strides = [1, 1]} : vector<2x96xf32> to vector<2x64xf32>
      %75 = arith.addf %73, %74 : vector<2x64xf32>
      %76 = arith.negf %75 : vector<2x64xf32>
      %77 = math.exp %76 : vector<2x64xf32>
      %cst_35 = arith.constant 1.000000e+00 : f32
      %78 = vector.broadcast %cst_35 : f32 to vector<2x64xf32>
      %79 = arith.addf %78, %77 : vector<2x64xf32>
      %80 = arith.divf %78, %79 : vector<2x64xf32>
      %81 = vector.extract_strided_slice %80 {offsets = [0, 0], sizes = [2, 32], strides = [1, 1]} : vector<2x64xf32> to vector<2x32xf32>
      %82 = vector.extract_strided_slice %80 {offsets = [0, 32], sizes = [2, 32], strides = [1, 1]} : vector<2x64xf32> to vector<2x32xf32>
      %83 = vector.extract_strided_slice %71 {offsets = [0, 64], sizes = [2, 32], strides = [1, 1]} : vector<2x96xf32> to vector<2x32xf32>
      %84 = vector.extract_strided_slice %72 {offsets = [0, 64], sizes = [2, 32], strides = [1, 1]} : vector<2x96xf32> to vector<2x32xf32>
      %85 = arith.addf %84, %8 : vector<2x32xf32>
      %86 = arith.mulf %81, %85 : vector<2x32xf32>
      %87 = arith.addf %83, %86 : vector<2x32xf32>
      %88 = math.tanh %87 : vector<2x32xf32>
      %cst_36 = arith.constant 1.000000e+00 : f32
      %89 = vector.broadcast %cst_36 : f32 to vector<2x32xf32>
      %90 = arith.subf %89, %82 : vector<2x32xf32>
      %91 = arith.mulf %90, %88 : vector<2x32xf32>
      %92 = arith.mulf %82, %66 : vector<2x32xf32>
      %93 = arith.addf %91, %92 : vector<2x32xf32>
      %c0_37 = arith.constant 0 : index
      %c2_38 = arith.constant 2 : index
      %c0_39 = arith.constant 0 : index
      %c0_40 = arith.constant 0 : index
      %94 = vector.load %arg5[%c0_37, %c2_38, %c0_39, %c0_40] : memref<1x8x2x32xf32, #tpu.memory_space<vmem>>, vector<1x1x2x32xf32>
      %95 = vector.shape_cast %94 : vector<1x1x2x32xf32> to vector<2x32xf32>
      %96 = vector.shape_cast %93 : vector<2x32xf32> to vector<1x1x2x32xf32>
      tpu.vector_store %arg5[%c0_37, %c2_38, %c0_39, %c0_40], %96 {strides = array<i32>} : memref<1x8x2x32xf32, #tpu.memory_space<vmem>>, vector<1x1x2x32xf32>,
      %c0_41 = arith.constant 0 : index
      %c3 = arith.constant 3 : index
      %c0_42 = arith.constant 0 : index
      %c0_43 = arith.constant 0 : index
      %97 = vector.load %arg2[%c0_41, %c3, %c0_42, %c0_43] : memref<1x8x2x96xf32, #tpu.memory_space<vmem>>, vector<1x1x2x96xf32>
      %98 = vector.shape_cast %97 : vector<1x1x2x96xf32> to vector<2x96xf32>
      %cst_44 = arith.constant dense<0.000000e+00> : vector<2x96xf32>
      %99 = tpu.matmul %93, %4, %cst_44 {dimension_numbers = #tpu.dot_dimension_numbers<[1], [0], [0], [1], [0, 0, 1, 1], [], []>} : vector<2x32xf32>, vector<32x96xf32>, vector<2x96xf32> -> vector<2x96xf32>
      %100 = vector.extract_strided_slice %98 {offsets = [0, 0], sizes = [2, 64], strides = [1, 1]} : vector<2x96xf32> to vector<2x64xf32>
      %101 = vector.extract_strided_slice %99 {offsets = [0, 0], sizes = [2, 64], strides = [1, 1]} : vector<2x96xf32> to vector<2x64xf32>
      %102 = arith.addf %100, %101 : vector<2x64xf32>
      %103 = arith.negf %102 : vector<2x64xf32>
      %104 = math.exp %103 : vector<2x64xf32>
      %cst_45 = arith.constant 1.000000e+00 : f32
      %105 = vector.broadcast %cst_45 : f32 to vector<2x64xf32>
      %106 = arith.addf %105, %104 : vector<2x64xf32>
      %107 = arith.divf %105, %106 : vector<2x64xf32>
      %108 = vector.extract_strided_slice %107 {offsets = [0, 0], sizes = [2, 32], strides = [1, 1]} : vector<2x64xf32> to vector<2x32xf32>
      %109 = vector.extract_strided_slice %107 {offsets = [0, 32], sizes = [2, 32], strides = [1, 1]} : vector<2x64xf32> to vector<2x32xf32>
      %110 = vector.extract_strided_slice %98 {offsets = [0, 64], sizes = [2, 32], strides = [1, 1]} : vector<2x96xf32> to vector<2x32xf32>
      %111 = vector.extract_strided_slice %99 {offsets = [0, 64], sizes = [2, 32], strides = [1, 1]} : vector<2x96xf32> to vector<2x32xf32>
      %112 = arith.addf %111, %8 : vector<2x32xf32>
      %113 = arith.mulf %108, %112 : vector<2x32xf32>
      %114 = arith.addf %110, %113 : vector<2x32xf32>
      %115 = math.tanh %114 : vector<2x32xf32>
      %cst_46 = arith.constant 1.000000e+00 : f32
      %116 = vector.broadcast %cst_46 : f32 to vector<2x32xf32>
      %117 = arith.subf %116, %109 : vector<2x32xf32>
      %118 = arith.mulf %117, %115 : vector<2x32xf32>
      %119 = arith.mulf %109, %93 : vector<2x32xf32>
      %120 = arith.addf %118, %119 : vector<2x32xf32>
      %c0_47 = arith.constant 0 : index
      %c3_48 = arith.constant 3 : index
      %c0_49 = arith.constant 0 : index
      %c0_50 = arith.constant 0 : index
      %121 = vector.load %arg5[%c0_47, %c3_48, %c0_49, %c0_50] : memref<1x8x2x32xf32, #tpu.memory_space<vmem>>, vector<1x1x2x32xf32>
      %122 = vector.shape_cast %121 : vector<1x1x2x32xf32> to vector<2x32xf32>
      %123 = vector.shape_cast %120 : vector<2x32xf32> to vector<1x1x2x32xf32>
      tpu.vector_store %arg5[%c0_47, %c3_48, %c0_49, %c0_50], %123 {strides = array<i32>} : memref<1x8x2x32xf32, #tpu.memory_space<vmem>>, vector<1x1x2x32xf32>,
      %c0_51 = arith.constant 0 : index
      %c4 = arith.constant 4 : index
      %c0_52 = arith.constant 0 : index
      %c0_53 = arith.constant 0 : index
      %124 = vector.load %arg2[%c0_51, %c4, %c0_52, %c0_53] : memref<1x8x2x96xf32, #tpu.memory_space<vmem>>, vector<1x1x2x96xf32>
      %125 = vector.shape_cast %124 : vector<1x1x2x96xf32> to vector<2x96xf32>
      %cst_54 = arith.constant dense<0.000000e+00> : vector<2x96xf32>
      %126 = tpu.matmul %120, %4, %cst_54 {dimension_numbers = #tpu.dot_dimension_numbers<[1], [0], [0], [1], [0, 0, 1, 1], [], []>} : vector<2x32xf32>, vector<32x96xf32>, vector<2x96xf32> -> vector<2x96xf32>
      %127 = vector.extract_strided_slice %125 {offsets = [0, 0], sizes = [2, 64], strides = [1, 1]} : vector<2x96xf32> to vector<2x64xf32>
      %128 = vector.extract_strided_slice %126 {offsets = [0, 0], sizes = [2, 64], strides = [1, 1]} : vector<2x96xf32> to vector<2x64xf32>
      %129 = arith.addf %127, %128 : vector<2x64xf32>
      %130 = arith.negf %129 : vector<2x64xf32>
      %131 = math.exp %130 : vector<2x64xf32>
      %cst_55 = arith.constant 1.000000e+00 : f32
      %132 = vector.broadcast %cst_55 : f32 to vector<2x64xf32>
      %133 = arith.addf %132, %131 : vector<2x64xf32>
      %134 = arith.divf %132, %133 : vector<2x64xf32>
      %135 = vector.extract_strided_slice %134 {offsets = [0, 0], sizes = [2, 32], strides = [1, 1]} : vector<2x64xf32> to vector<2x32xf32>
      %136 = vector.extract_strided_slice %134 {offsets = [0, 32], sizes = [2, 32], strides = [1, 1]} : vector<2x64xf32> to vector<2x32xf32>
      %137 = vector.extract_strided_slice %125 {offsets = [0, 64], sizes = [2, 32], strides = [1, 1]} : vector<2x96xf32> to vector<2x32xf32>
      %138 = vector.extract_strided_slice %126 {offsets = [0, 64], sizes = [2, 32], strides = [1, 1]} : vector<2x96xf32> to vector<2x32xf32>
      %139 = arith.addf %138, %8 : vector<2x32xf32>
      %140 = arith.mulf %135, %139 : vector<2x32xf32>
      %141 = arith.addf %137, %140 : vector<2x32xf32>
      %142 = math.tanh %141 : vector<2x32xf32>
      %cst_56 = arith.constant 1.000000e+00 : f32
      %143 = vector.broadcast %cst_56 : f32 to vector<2x32xf32>
      %144 = arith.subf %143, %136 : vector<2x32xf32>
      %145 = arith.mulf %144, %142 : vector<2x32xf32>
      %146 = arith.mulf %136, %120 : vector<2x32xf32>
      %147 = arith.addf %145, %146 : vector<2x32xf32>
      %c0_57 = arith.constant 0 : index
      %c4_58 = arith.constant 4 : index
      %c0_59 = arith.constant 0 : index
      %c0_60 = arith.constant 0 : index
      %148 = vector.load %arg5[%c0_57, %c4_58, %c0_59, %c0_60] : memref<1x8x2x32xf32, #tpu.memory_space<vmem>>, vector<1x1x2x32xf32>
      %149 = vector.shape_cast %148 : vector<1x1x2x32xf32> to vector<2x32xf32>
      %150 = vector.shape_cast %147 : vector<2x32xf32> to vector<1x1x2x32xf32>
      tpu.vector_store %arg5[%c0_57, %c4_58, %c0_59, %c0_60], %150 {strides = array<i32>} : memref<1x8x2x32xf32, #tpu.memory_space<vmem>>, vector<1x1x2x32xf32>,
      %c0_61 = arith.constant 0 : index
      %c5 = arith.constant 5 : index
      %c0_62 = arith.constant 0 : index
      %c0_63 = arith.constant 0 : index
      %151 = vector.load %arg2[%c0_61, %c5, %c0_62, %c0_63] : memref<1x8x2x96xf32, #tpu.memory_space<vmem>>, vector<1x1x2x96xf32>
      %152 = vector.shape_cast %151 : vector<1x1x2x96xf32> to vector<2x96xf32>
      %cst_64 = arith.constant dense<0.000000e+00> : vector<2x96xf32>
      %153 = tpu.matmul %147, %4, %cst_64 {dimension_numbers = #tpu.dot_dimension_numbers<[1], [0], [0], [1], [0, 0, 1, 1], [], []>} : vector<2x32xf32>, vector<32x96xf32>, vector<2x96xf32> -> vector<2x96xf32>
      %154 = vector.extract_strided_slice %152 {offsets = [0, 0], sizes = [2, 64], strides = [1, 1]} : vector<2x96xf32> to vector<2x64xf32>
      %155 = vector.extract_strided_slice %153 {offsets = [0, 0], sizes = [2, 64], strides = [1, 1]} : vector<2x96xf32> to vector<2x64xf32>
      %156 = arith.addf %154, %155 : vector<2x64xf32>
      %157 = arith.negf %156 : vector<2x64xf32>
      %158 = math.exp %157 : vector<2x64xf32>
      %cst_65 = arith.constant 1.000000e+00 : f32
      %159 = vector.broadcast %cst_65 : f32 to vector<2x64xf32>
      %160 = arith.addf %159, %158 : vector<2x64xf32>
      %161 = arith.divf %159, %160 : vector<2x64xf32>
      %162 = vector.extract_strided_slice %161 {offsets = [0, 0], sizes = [2, 32], strides = [1, 1]} : vector<2x64xf32> to vector<2x32xf32>
      %163 = vector.extract_strided_slice %161 {offsets = [0, 32], sizes = [2, 32], strides = [1, 1]} : vector<2x64xf32> to vector<2x32xf32>
      %164 = vector.extract_strided_slice %152 {offsets = [0, 64], sizes = [2, 32], strides = [1, 1]} : vector<2x96xf32> to vector<2x32xf32>
      %165 = vector.extract_strided_slice %153 {offsets = [0, 64], sizes = [2, 32], strides = [1, 1]} : vector<2x96xf32> to vector<2x32xf32>
      %166 = arith.addf %165, %8 : vector<2x32xf32>
      %167 = arith.mulf %162, %166 : vector<2x32xf32>
      %168 = arith.addf %164, %167 : vector<2x32xf32>
      %169 = math.tanh %168 : vector<2x32xf32>
      %cst_66 = arith.constant 1.000000e+00 : f32
      %170 = vector.broadcast %cst_66 : f32 to vector<2x32xf32>
      %171 = arith.subf %170, %163 : vector<2x32xf32>
      %172 = arith.mulf %171, %169 : vector<2x32xf32>
      %173 = arith.mulf %163, %147 : vector<2x32xf32>
      %174 = arith.addf %172, %173 : vector<2x32xf32>
      %c0_67 = arith.constant 0 : index
      %c5_68 = arith.constant 5 : index
      %c0_69 = arith.constant 0 : index
      %c0_70 = arith.constant 0 : index
      %175 = vector.load %arg5[%c0_67, %c5_68, %c0_69, %c0_70] : memref<1x8x2x32xf32, #tpu.memory_space<vmem>>, vector<1x1x2x32xf32>
      %176 = vector.shape_cast %175 : vector<1x1x2x32xf32> to vector<2x32xf32>
      %177 = vector.shape_cast %174 : vector<2x32xf32> to vector<1x1x2x32xf32>
      tpu.vector_store %arg5[%c0_67, %c5_68, %c0_69, %c0_70], %177 {strides = array<i32>} : memref<1x8x2x32xf32, #tpu.memory_space<vmem>>, vector<1x1x2x32xf32>,
      %c0_71 = arith.constant 0 : index
      %c6 = arith.constant 6 : index
      %c0_72 = arith.constant 0 : index
      %c0_73 = arith.constant 0 : index
      %178 = vector.load %arg2[%c0_71, %c6, %c0_72, %c0_73] : memref<1x8x2x96xf32, #tpu.memory_space<vmem>>, vector<1x1x2x96xf32>
      %179 = vector.shape_cast %178 : vector<1x1x2x96xf32> to vector<2x96xf32>
      %cst_74 = arith.constant dense<0.000000e+00> : vector<2x96xf32>
      %180 = tpu.matmul %174, %4, %cst_74 {dimension_numbers = #tpu.dot_dimension_numbers<[1], [0], [0], [1], [0, 0, 1, 1], [], []>} : vector<2x32xf32>, vector<32x96xf32>, vector<2x96xf32> -> vector<2x96xf32>
      %181 = vector.extract_strided_slice %179 {offsets = [0, 0], sizes = [2, 64], strides = [1, 1]} : vector<2x96xf32> to vector<2x64xf32>
      %182 = vector.extract_strided_slice %180 {offsets = [0, 0], sizes = [2, 64], strides = [1, 1]} : vector<2x96xf32> to vector<2x64xf32>
      %183 = arith.addf %181, %182 : vector<2x64xf32>
      %184 = arith.negf %183 : vector<2x64xf32>
      %185 = math.exp %184 : vector<2x64xf32>
      %cst_75 = arith.constant 1.000000e+00 : f32
      %186 = vector.broadcast %cst_75 : f32 to vector<2x64xf32>
      %187 = arith.addf %186, %185 : vector<2x64xf32>
      %188 = arith.divf %186, %187 : vector<2x64xf32>
      %189 = vector.extract_strided_slice %188 {offsets = [0, 0], sizes = [2, 32], strides = [1, 1]} : vector<2x64xf32> to vector<2x32xf32>
      %190 = vector.extract_strided_slice %188 {offsets = [0, 32], sizes = [2, 32], strides = [1, 1]} : vector<2x64xf32> to vector<2x32xf32>
      %191 = vector.extract_strided_slice %179 {offsets = [0, 64], sizes = [2, 32], strides = [1, 1]} : vector<2x96xf32> to vector<2x32xf32>
      %192 = vector.extract_strided_slice %180 {offsets = [0, 64], sizes = [2, 32], strides = [1, 1]} : vector<2x96xf32> to vector<2x32xf32>
      %193 = arith.addf %192, %8 : vector<2x32xf32>
      %194 = arith.mulf %189, %193 : vector<2x32xf32>
      %195 = arith.addf %191, %194 : vector<2x32xf32>
      %196 = math.tanh %195 : vector<2x32xf32>
      %cst_76 = arith.constant 1.000000e+00 : f32
      %197 = vector.broadcast %cst_76 : f32 to vector<2x32xf32>
      %198 = arith.subf %197, %190 : vector<2x32xf32>
      %199 = arith.mulf %198, %196 : vector<2x32xf32>
      %200 = arith.mulf %190, %174 : vector<2x32xf32>
      %201 = arith.addf %199, %200 : vector<2x32xf32>
      %c0_77 = arith.constant 0 : index
      %c6_78 = arith.constant 6 : index
      %c0_79 = arith.constant 0 : index
      %c0_80 = arith.constant 0 : index
      %202 = vector.load %arg5[%c0_77, %c6_78, %c0_79, %c0_80] : memref<1x8x2x32xf32, #tpu.memory_space<vmem>>, vector<1x1x2x32xf32>
      %203 = vector.shape_cast %202 : vector<1x1x2x32xf32> to vector<2x32xf32>
      %204 = vector.shape_cast %201 : vector<2x32xf32> to vector<1x1x2x32xf32>
      tpu.vector_store %arg5[%c0_77, %c6_78, %c0_79, %c0_80], %204 {strides = array<i32>} : memref<1x8x2x32xf32, #tpu.memory_space<vmem>>, vector<1x1x2x32xf32>,
      %c0_81 = arith.constant 0 : index
      %c7 = arith.constant 7 : index
      %c0_82 = arith.constant 0 : index
      %c0_83 = arith.constant 0 : index
      %205 = vector.load %arg2[%c0_81, %c7, %c0_82, %c0_83] : memref<1x8x2x96xf32, #tpu.memory_space<vmem>>, vector<1x1x2x96xf32>
      %206 = vector.shape_cast %205 : vector<1x1x2x96xf32> to vector<2x96xf32>
      %cst_84 = arith.constant dense<0.000000e+00> : vector<2x96xf32>
      %207 = tpu.matmul %201, %4, %cst_84 {dimension_numbers = #tpu.dot_dimension_numbers<[1], [0], [0], [1], [0, 0, 1, 1], [], []>} : vector<2x32xf32>, vector<32x96xf32>, vector<2x96xf32> -> vector<2x96xf32>
      %208 = vector.extract_strided_slice %206 {offsets = [0, 0], sizes = [2, 64], strides = [1, 1]} : vector<2x96xf32> to vector<2x64xf32>
      %209 = vector.extract_strided_slice %207 {offsets = [0, 0], sizes = [2, 64], strides = [1, 1]} : vector<2x96xf32> to vector<2x64xf32>
      %210 = arith.addf %208, %209 : vector<2x64xf32>
      %211 = arith.negf %210 : vector<2x64xf32>
      %212 = math.exp %211 : vector<2x64xf32>
      %cst_85 = arith.constant 1.000000e+00 : f32
      %213 = vector.broadcast %cst_85 : f32 to vector<2x64xf32>
      %214 = arith.addf %213, %212 : vector<2x64xf32>
      %215 = arith.divf %213, %214 : vector<2x64xf32>
      %216 = vector.extract_strided_slice %215 {offsets = [0, 0], sizes = [2, 32], strides = [1, 1]} : vector<2x64xf32> to vector<2x32xf32>
      %217 = vector.extract_strided_slice %215 {offsets = [0, 32], sizes = [2, 32], strides = [1, 1]} : vector<2x64xf32> to vector<2x32xf32>
      %218 = vector.extract_strided_slice %206 {offsets = [0, 64], sizes = [2, 32], strides = [1, 1]} : vector<2x96xf32> to vector<2x32xf32>
      %219 = vector.extract_strided_slice %207 {offsets = [0, 64], sizes = [2, 32], strides = [1, 1]} : vector<2x96xf32> to vector<2x32xf32>
      %220 = arith.addf %219, %8 : vector<2x32xf32>
      %221 = arith.mulf %216, %220 : vector<2x32xf32>
      %222 = arith.addf %218, %221 : vector<2x32xf32>
      %223 = math.tanh %222 : vector<2x32xf32>
      %cst_86 = arith.constant 1.000000e+00 : f32
      %224 = vector.broadcast %cst_86 : f32 to vector<2x32xf32>
      %225 = arith.subf %224, %217 : vector<2x32xf32>
      %226 = arith.mulf %225, %223 : vector<2x32xf32>
      %227 = arith.mulf %217, %201 : vector<2x32xf32>
      %228 = arith.addf %226, %227 : vector<2x32xf32>
      %c0_87 = arith.constant 0 : index
      %c7_88 = arith.constant 7 : index
      %c0_89 = arith.constant 0 : index
      %c0_90 = arith.constant 0 : index
      %229 = vector.load %arg5[%c0_87, %c7_88, %c0_89, %c0_90] : memref<1x8x2x32xf32, #tpu.memory_space<vmem>>, vector<1x1x2x32xf32>
      %230 = vector.shape_cast %229 : vector<1x1x2x32xf32> to vector<2x32xf32>
      %231 = vector.shape_cast %228 : vector<2x32xf32> to vector<1x1x2x32xf32>
      tpu.vector_store %arg5[%c0_87, %c7_88, %c0_89, %c0_90], %231 {strides = array<i32>} : memref<1x8x2x32xf32, #tpu.memory_space<vmem>>, vector<1x1x2x32xf32>,
      %c0_91 = arith.constant 0 : index
      %c0_92 = arith.constant 0 : index
      %232 = vector.load %arg6[%c0_91, %c0_92] : memref<2x32xf32, #tpu.memory_space<vmem>>, vector<2x32xf32>
      tpu.vector_store %arg6[%c0_91, %c0_92], %228 {strides = array<i32>} : memref<2x32xf32, #tpu.memory_space<vmem>>, vector<2x32xf32>,
    } else {
    }
    %c1_i32 = arith.constant 1 : i32
    %12 = arith.cmpi eq, %arg0, %c1_i32 : i32
    %13 = arith.extui %12 : i1 to i32
    %c0_i32_8 = arith.constant 0 : i32
    %14 = arith.cmpi ne, %13, %c0_i32_8 : i32
    scf.if %14 {
      %c0_9 = arith.constant 0 : index
      %c0_10 = arith.constant 0 : index
      %15 = vector.load %arg6[%c0_9, %c0_10] : memref<2x32xf32, #tpu.memory_space<vmem>>, vector<2x32xf32>
      %c0_11 = arith.constant 0 : index
      %c7 = arith.constant 7 : index
      %c0_12 = arith.constant 0 : index
      %c0_13 = arith.constant 0 : index
      %16 = vector.load %arg2[%c0_11, %c7, %c0_12, %c0_13] : memref<1x8x2x96xf32, #tpu.memory_space<vmem>>, vector<1x1x2x96xf32>
      %17 = vector.shape_cast %16 : vector<1x1x2x96xf32> to vector<2x96xf32>
      %cst = arith.constant dense<0.000000e+00> : vector<2x96xf32>
      %18 = tpu.matmul %15, %4, %cst {dimension_numbers = #tpu.dot_dimension_numbers<[1], [0], [0], [1], [0, 0, 1, 1], [], []>} : vector<2x32xf32>, vector<32x96xf32>, vector<2x96xf32> -> vector<2x96xf32>
      %19 = vector.extract_strided_slice %17 {offsets = [0, 0], sizes = [2, 64], strides = [1, 1]} : vector<2x96xf32> to vector<2x64xf32>
      %20 = vector.extract_strided_slice %18 {offsets = [0, 0], sizes = [2, 64], strides = [1, 1]} : vector<2x96xf32> to vector<2x64xf32>
      %21 = arith.addf %19, %20 : vector<2x64xf32>
      %22 = arith.negf %21 : vector<2x64xf32>
      %23 = math.exp %22 : vector<2x64xf32>
      %cst_14 = arith.constant 1.000000e+00 : f32
      %24 = vector.broadcast %cst_14 : f32 to vector<2x64xf32>
      %25 = arith.addf %24, %23 : vector<2x64xf32>
      %26 = arith.divf %24, %25 : vector<2x64xf32>
      %27 = vector.extract_strided_slice %26 {offsets = [0, 0], sizes = [2, 32], strides = [1, 1]} : vector<2x64xf32> to vector<2x32xf32>
      %28 = vector.extract_strided_slice %26 {offsets = [0, 32], sizes = [2, 32], strides = [1, 1]} : vector<2x64xf32> to vector<2x32xf32>
      %29 = vector.extract_strided_slice %17 {offsets = [0, 64], sizes = [2, 32], strides = [1, 1]} : vector<2x96xf32> to vector<2x32xf32>
      %30 = vector.extract_strided_slice %18 {offsets = [0, 64], sizes = [2, 32], strides = [1, 1]} : vector<2x96xf32> to vector<2x32xf32>
      %31 = arith.addf %30, %8 : vector<2x32xf32>
      %32 = arith.mulf %27, %31 : vector<2x32xf32>
      %33 = arith.addf %29, %32 : vector<2x32xf32>
      %34 = math.tanh %33 : vector<2x32xf32>
      %cst_15 = arith.constant 1.000000e+00 : f32
      %35 = vector.broadcast %cst_15 : f32 to vector<2x32xf32>
      %36 = arith.subf %35, %28 : vector<2x32xf32>
      %37 = arith.mulf %36, %34 : vector<2x32xf32>
      %38 = arith.mulf %28, %15 : vector<2x32xf32>
      %39 = arith.addf %37, %38 : vector<2x32xf32>
      %c0_16 = arith.constant 0 : index
      %c7_17 = arith.constant 7 : index
      %c0_18 = arith.constant 0 : index
      %c0_19 = arith.constant 0 : index
      %40 = vector.load %arg5[%c0_16, %c7_17, %c0_18, %c0_19] : memref<1x8x2x32xf32, #tpu.memory_space<vmem>>, vector<1x1x2x32xf32>
      %41 = vector.shape_cast %40 : vector<1x1x2x32xf32> to vector<2x32xf32>
      %42 = vector.shape_cast %39 : vector<2x32xf32> to vector<1x1x2x32xf32>
      tpu.vector_store %arg5[%c0_16, %c7_17, %c0_18, %c0_19], %42 {strides = array<i32>} : memref<1x8x2x32xf32, #tpu.memory_space<vmem>>, vector<1x1x2x32xf32>,
      %c0_20 = arith.constant 0 : index
      %c6 = arith.constant 6 : index
      %c0_21 = arith.constant 0 : index
      %c0_22 = arith.constant 0 : index
      %43 = vector.load %arg2[%c0_20, %c6, %c0_21, %c0_22] : memref<1x8x2x96xf32, #tpu.memory_space<vmem>>, vector<1x1x2x96xf32>
      %44 = vector.shape_cast %43 : vector<1x1x2x96xf32> to vector<2x96xf32>
      %cst_23 = arith.constant dense<0.000000e+00> : vector<2x96xf32>
      %45 = tpu.matmul %39, %4, %cst_23 {dimension_numbers = #tpu.dot_dimension_numbers<[1], [0], [0], [1], [0, 0, 1, 1], [], []>} : vector<2x32xf32>, vector<32x96xf32>, vector<2x96xf32> -> vector<2x96xf32>
      %46 = vector.extract_strided_slice %44 {offsets = [0, 0], sizes = [2, 64], strides = [1, 1]} : vector<2x96xf32> to vector<2x64xf32>
      %47 = vector.extract_strided_slice %45 {offsets = [0, 0], sizes = [2, 64], strides = [1, 1]} : vector<2x96xf32> to vector<2x64xf32>
      %48 = arith.addf %46, %47 : vector<2x64xf32>
      %49 = arith.negf %48 : vector<2x64xf32>
      %50 = math.exp %49 : vector<2x64xf32>
      %cst_24 = arith.constant 1.000000e+00 : f32
      %51 = vector.broadcast %cst_24 : f32 to vector<2x64xf32>
      %52 = arith.addf %51, %50 : vector<2x64xf32>
      %53 = arith.divf %51, %52 : vector<2x64xf32>
      %54 = vector.extract_strided_slice %53 {offsets = [0, 0], sizes = [2, 32], strides = [1, 1]} : vector<2x64xf32> to vector<2x32xf32>
      %55 = vector.extract_strided_slice %53 {offsets = [0, 32], sizes = [2, 32], strides = [1, 1]} : vector<2x64xf32> to vector<2x32xf32>
      %56 = vector.extract_strided_slice %44 {offsets = [0, 64], sizes = [2, 32], strides = [1, 1]} : vector<2x96xf32> to vector<2x32xf32>
      %57 = vector.extract_strided_slice %45 {offsets = [0, 64], sizes = [2, 32], strides = [1, 1]} : vector<2x96xf32> to vector<2x32xf32>
      %58 = arith.addf %57, %8 : vector<2x32xf32>
      %59 = arith.mulf %54, %58 : vector<2x32xf32>
      %60 = arith.addf %56, %59 : vector<2x32xf32>
      %61 = math.tanh %60 : vector<2x32xf32>
      %cst_25 = arith.constant 1.000000e+00 : f32
      %62 = vector.broadcast %cst_25 : f32 to vector<2x32xf32>
      %63 = arith.subf %62, %55 : vector<2x32xf32>
      %64 = arith.mulf %63, %61 : vector<2x32xf32>
      %65 = arith.mulf %55, %39 : vector<2x32xf32>
      %66 = arith.addf %64, %65 : vector<2x32xf32>
      %c0_26 = arith.constant 0 : index
      %c6_27 = arith.constant 6 : index
      %c0_28 = arith.constant 0 : index
      %c0_29 = arith.constant 0 : index
      %67 = vector.load %arg5[%c0_26, %c6_27, %c0_28, %c0_29] : memref<1x8x2x32xf32, #tpu.memory_space<vmem>>, vector<1x1x2x32xf32>
      %68 = vector.shape_cast %67 : vector<1x1x2x32xf32> to vector<2x32xf32>
      %69 = vector.shape_cast %66 : vector<2x32xf32> to vector<1x1x2x32xf32>
      tpu.vector_store %arg5[%c0_26, %c6_27, %c0_28, %c0_29], %69 {strides = array<i32>} : memref<1x8x2x32xf32, #tpu.memory_space<vmem>>, vector<1x1x2x32xf32>,
      %c0_30 = arith.constant 0 : index
      %c5 = arith.constant 5 : index
      %c0_31 = arith.constant 0 : index
      %c0_32 = arith.constant 0 : index
      %70 = vector.load %arg2[%c0_30, %c5, %c0_31, %c0_32] : memref<1x8x2x96xf32, #tpu.memory_space<vmem>>, vector<1x1x2x96xf32>
      %71 = vector.shape_cast %70 : vector<1x1x2x96xf32> to vector<2x96xf32>
      %cst_33 = arith.constant dense<0.000000e+00> : vector<2x96xf32>
      %72 = tpu.matmul %66, %4, %cst_33 {dimension_numbers = #tpu.dot_dimension_numbers<[1], [0], [0], [1], [0, 0, 1, 1], [], []>} : vector<2x32xf32>, vector<32x96xf32>, vector<2x96xf32> -> vector<2x96xf32>
      %73 = vector.extract_strided_slice %71 {offsets = [0, 0], sizes = [2, 64], strides = [1, 1]} : vector<2x96xf32> to vector<2x64xf32>
      %74 = vector.extract_strided_slice %72 {offsets = [0, 0], sizes = [2, 64], strides = [1, 1]} : vector<2x96xf32> to vector<2x64xf32>
      %75 = arith.addf %73, %74 : vector<2x64xf32>
      %76 = arith.negf %75 : vector<2x64xf32>
      %77 = math.exp %76 : vector<2x64xf32>
      %cst_34 = arith.constant 1.000000e+00 : f32
      %78 = vector.broadcast %cst_34 : f32 to vector<2x64xf32>
      %79 = arith.addf %78, %77 : vector<2x64xf32>
      %80 = arith.divf %78, %79 : vector<2x64xf32>
      %81 = vector.extract_strided_slice %80 {offsets = [0, 0], sizes = [2, 32], strides = [1, 1]} : vector<2x64xf32> to vector<2x32xf32>
      %82 = vector.extract_strided_slice %80 {offsets = [0, 32], sizes = [2, 32], strides = [1, 1]} : vector<2x64xf32> to vector<2x32xf32>
      %83 = vector.extract_strided_slice %71 {offsets = [0, 64], sizes = [2, 32], strides = [1, 1]} : vector<2x96xf32> to vector<2x32xf32>
      %84 = vector.extract_strided_slice %72 {offsets = [0, 64], sizes = [2, 32], strides = [1, 1]} : vector<2x96xf32> to vector<2x32xf32>
      %85 = arith.addf %84, %8 : vector<2x32xf32>
      %86 = arith.mulf %81, %85 : vector<2x32xf32>
      %87 = arith.addf %83, %86 : vector<2x32xf32>
      %88 = math.tanh %87 : vector<2x32xf32>
      %cst_35 = arith.constant 1.000000e+00 : f32
      %89 = vector.broadcast %cst_35 : f32 to vector<2x32xf32>
      %90 = arith.subf %89, %82 : vector<2x32xf32>
      %91 = arith.mulf %90, %88 : vector<2x32xf32>
      %92 = arith.mulf %82, %66 : vector<2x32xf32>
      %93 = arith.addf %91, %92 : vector<2x32xf32>
      %c0_36 = arith.constant 0 : index
      %c5_37 = arith.constant 5 : index
      %c0_38 = arith.constant 0 : index
      %c0_39 = arith.constant 0 : index
      %94 = vector.load %arg5[%c0_36, %c5_37, %c0_38, %c0_39] : memref<1x8x2x32xf32, #tpu.memory_space<vmem>>, vector<1x1x2x32xf32>
      %95 = vector.shape_cast %94 : vector<1x1x2x32xf32> to vector<2x32xf32>
      %96 = vector.shape_cast %93 : vector<2x32xf32> to vector<1x1x2x32xf32>
      tpu.vector_store %arg5[%c0_36, %c5_37, %c0_38, %c0_39], %96 {strides = array<i32>} : memref<1x8x2x32xf32, #tpu.memory_space<vmem>>, vector<1x1x2x32xf32>,
      %c0_40 = arith.constant 0 : index
      %c4 = arith.constant 4 : index
      %c0_41 = arith.constant 0 : index
      %c0_42 = arith.constant 0 : index
      %97 = vector.load %arg2[%c0_40, %c4, %c0_41, %c0_42] : memref<1x8x2x96xf32, #tpu.memory_space<vmem>>, vector<1x1x2x96xf32>
      %98 = vector.shape_cast %97 : vector<1x1x2x96xf32> to vector<2x96xf32>
      %cst_43 = arith.constant dense<0.000000e+00> : vector<2x96xf32>
      %99 = tpu.matmul %93, %4, %cst_43 {dimension_numbers = #tpu.dot_dimension_numbers<[1], [0], [0], [1], [0, 0, 1, 1], [], []>} : vector<2x32xf32>, vector<32x96xf32>, vector<2x96xf32> -> vector<2x96xf32>
      %100 = vector.extract_strided_slice %98 {offsets = [0, 0], sizes = [2, 64], strides = [1, 1]} : vector<2x96xf32> to vector<2x64xf32>
      %101 = vector.extract_strided_slice %99 {offsets = [0, 0], sizes = [2, 64], strides = [1, 1]} : vector<2x96xf32> to vector<2x64xf32>
      %102 = arith.addf %100, %101 : vector<2x64xf32>
      %103 = arith.negf %102 : vector<2x64xf32>
      %104 = math.exp %103 : vector<2x64xf32>
      %cst_44 = arith.constant 1.000000e+00 : f32
      %105 = vector.broadcast %cst_44 : f32 to vector<2x64xf32>
      %106 = arith.addf %105, %104 : vector<2x64xf32>
      %107 = arith.divf %105, %106 : vector<2x64xf32>
      %108 = vector.extract_strided_slice %107 {offsets = [0, 0], sizes = [2, 32], strides = [1, 1]} : vector<2x64xf32> to vector<2x32xf32>
      %109 = vector.extract_strided_slice %107 {offsets = [0, 32], sizes = [2, 32], strides = [1, 1]} : vector<2x64xf32> to vector<2x32xf32>
      %110 = vector.extract_strided_slice %98 {offsets = [0, 64], sizes = [2, 32], strides = [1, 1]} : vector<2x96xf32> to vector<2x32xf32>
      %111 = vector.extract_strided_slice %99 {offsets = [0, 64], sizes = [2, 32], strides = [1, 1]} : vector<2x96xf32> to vector<2x32xf32>
      %112 = arith.addf %111, %8 : vector<2x32xf32>
      %113 = arith.mulf %108, %112 : vector<2x32xf32>
      %114 = arith.addf %110, %113 : vector<2x32xf32>
      %115 = math.tanh %114 : vector<2x32xf32>
      %cst_45 = arith.constant 1.000000e+00 : f32
      %116 = vector.broadcast %cst_45 : f32 to vector<2x32xf32>
      %117 = arith.subf %116, %109 : vector<2x32xf32>
      %118 = arith.mulf %117, %115 : vector<2x32xf32>
      %119 = arith.mulf %109, %93 : vector<2x32xf32>
      %120 = arith.addf %118, %119 : vector<2x32xf32>
      %c0_46 = arith.constant 0 : index
      %c4_47 = arith.constant 4 : index
      %c0_48 = arith.constant 0 : index
      %c0_49 = arith.constant 0 : index
      %121 = vector.load %arg5[%c0_46, %c4_47, %c0_48, %c0_49] : memref<1x8x2x32xf32, #tpu.memory_space<vmem>>, vector<1x1x2x32xf32>
      %122 = vector.shape_cast %121 : vector<1x1x2x32xf32> to vector<2x32xf32>
      %123 = vector.shape_cast %120 : vector<2x32xf32> to vector<1x1x2x32xf32>
      tpu.vector_store %arg5[%c0_46, %c4_47, %c0_48, %c0_49], %123 {strides = array<i32>} : memref<1x8x2x32xf32, #tpu.memory_space<vmem>>, vector<1x1x2x32xf32>,
      %c0_50 = arith.constant 0 : index
      %c3 = arith.constant 3 : index
      %c0_51 = arith.constant 0 : index
      %c0_52 = arith.constant 0 : index
      %124 = vector.load %arg2[%c0_50, %c3, %c0_51, %c0_52] : memref<1x8x2x96xf32, #tpu.memory_space<vmem>>, vector<1x1x2x96xf32>
      %125 = vector.shape_cast %124 : vector<1x1x2x96xf32> to vector<2x96xf32>
      %cst_53 = arith.constant dense<0.000000e+00> : vector<2x96xf32>
      %126 = tpu.matmul %120, %4, %cst_53 {dimension_numbers = #tpu.dot_dimension_numbers<[1], [0], [0], [1], [0, 0, 1, 1], [], []>} : vector<2x32xf32>, vector<32x96xf32>, vector<2x96xf32> -> vector<2x96xf32>
      %127 = vector.extract_strided_slice %125 {offsets = [0, 0], sizes = [2, 64], strides = [1, 1]} : vector<2x96xf32> to vector<2x64xf32>
      %128 = vector.extract_strided_slice %126 {offsets = [0, 0], sizes = [2, 64], strides = [1, 1]} : vector<2x96xf32> to vector<2x64xf32>
      %129 = arith.addf %127, %128 : vector<2x64xf32>
      %130 = arith.negf %129 : vector<2x64xf32>
      %131 = math.exp %130 : vector<2x64xf32>
      %cst_54 = arith.constant 1.000000e+00 : f32
      %132 = vector.broadcast %cst_54 : f32 to vector<2x64xf32>
      %133 = arith.addf %132, %131 : vector<2x64xf32>
      %134 = arith.divf %132, %133 : vector<2x64xf32>
      %135 = vector.extract_strided_slice %134 {offsets = [0, 0], sizes = [2, 32], strides = [1, 1]} : vector<2x64xf32> to vector<2x32xf32>
      %136 = vector.extract_strided_slice %134 {offsets = [0, 32], sizes = [2, 32], strides = [1, 1]} : vector<2x64xf32> to vector<2x32xf32>
      %137 = vector.extract_strided_slice %125 {offsets = [0, 64], sizes = [2, 32], strides = [1, 1]} : vector<2x96xf32> to vector<2x32xf32>
      %138 = vector.extract_strided_slice %126 {offsets = [0, 64], sizes = [2, 32], strides = [1, 1]} : vector<2x96xf32> to vector<2x32xf32>
      %139 = arith.addf %138, %8 : vector<2x32xf32>
      %140 = arith.mulf %135, %139 : vector<2x32xf32>
      %141 = arith.addf %137, %140 : vector<2x32xf32>
      %142 = math.tanh %141 : vector<2x32xf32>
      %cst_55 = arith.constant 1.000000e+00 : f32
      %143 = vector.broadcast %cst_55 : f32 to vector<2x32xf32>
      %144 = arith.subf %143, %136 : vector<2x32xf32>
      %145 = arith.mulf %144, %142 : vector<2x32xf32>
      %146 = arith.mulf %136, %120 : vector<2x32xf32>
      %147 = arith.addf %145, %146 : vector<2x32xf32>
      %c0_56 = arith.constant 0 : index
      %c3_57 = arith.constant 3 : index
      %c0_58 = arith.constant 0 : index
      %c0_59 = arith.constant 0 : index
      %148 = vector.load %arg5[%c0_56, %c3_57, %c0_58, %c0_59] : memref<1x8x2x32xf32, #tpu.memory_space<vmem>>, vector<1x1x2x32xf32>
      %149 = vector.shape_cast %148 : vector<1x1x2x32xf32> to vector<2x32xf32>
      %150 = vector.shape_cast %147 : vector<2x32xf32> to vector<1x1x2x32xf32>
      tpu.vector_store %arg5[%c0_56, %c3_57, %c0_58, %c0_59], %150 {strides = array<i32>} : memref<1x8x2x32xf32, #tpu.memory_space<vmem>>, vector<1x1x2x32xf32>,
      %c0_60 = arith.constant 0 : index
      %c2 = arith.constant 2 : index
      %c0_61 = arith.constant 0 : index
      %c0_62 = arith.constant 0 : index
      %151 = vector.load %arg2[%c0_60, %c2, %c0_61, %c0_62] : memref<1x8x2x96xf32, #tpu.memory_space<vmem>>, vector<1x1x2x96xf32>
      %152 = vector.shape_cast %151 : vector<1x1x2x96xf32> to vector<2x96xf32>
      %cst_63 = arith.constant dense<0.000000e+00> : vector<2x96xf32>
      %153 = tpu.matmul %147, %4, %cst_63 {dimension_numbers = #tpu.dot_dimension_numbers<[1], [0], [0], [1], [0, 0, 1, 1], [], []>} : vector<2x32xf32>, vector<32x96xf32>, vector<2x96xf32> -> vector<2x96xf32>
      %154 = vector.extract_strided_slice %152 {offsets = [0, 0], sizes = [2, 64], strides = [1, 1]} : vector<2x96xf32> to vector<2x64xf32>
      %155 = vector.extract_strided_slice %153 {offsets = [0, 0], sizes = [2, 64], strides = [1, 1]} : vector<2x96xf32> to vector<2x64xf32>
      %156 = arith.addf %154, %155 : vector<2x64xf32>
      %157 = arith.negf %156 : vector<2x64xf32>
      %158 = math.exp %157 : vector<2x64xf32>
      %cst_64 = arith.constant 1.000000e+00 : f32
      %159 = vector.broadcast %cst_64 : f32 to vector<2x64xf32>
      %160 = arith.addf %159, %158 : vector<2x64xf32>
      %161 = arith.divf %159, %160 : vector<2x64xf32>
      %162 = vector.extract_strided_slice %161 {offsets = [0, 0], sizes = [2, 32], strides = [1, 1]} : vector<2x64xf32> to vector<2x32xf32>
      %163 = vector.extract_strided_slice %161 {offsets = [0, 32], sizes = [2, 32], strides = [1, 1]} : vector<2x64xf32> to vector<2x32xf32>
      %164 = vector.extract_strided_slice %152 {offsets = [0, 64], sizes = [2, 32], strides = [1, 1]} : vector<2x96xf32> to vector<2x32xf32>
      %165 = vector.extract_strided_slice %153 {offsets = [0, 64], sizes = [2, 32], strides = [1, 1]} : vector<2x96xf32> to vector<2x32xf32>
      %166 = arith.addf %165, %8 : vector<2x32xf32>
      %167 = arith.mulf %162, %166 : vector<2x32xf32>
      %168 = arith.addf %164, %167 : vector<2x32xf32>
      %169 = math.tanh %168 : vector<2x32xf32>
      %cst_65 = arith.constant 1.000000e+00 : f32
      %170 = vector.broadcast %cst_65 : f32 to vector<2x32xf32>
      %171 = arith.subf %170, %163 : vector<2x32xf32>
      %172 = arith.mulf %171, %169 : vector<2x32xf32>
      %173 = arith.mulf %163, %147 : vector<2x32xf32>
      %174 = arith.addf %172, %173 : vector<2x32xf32>
      %c0_66 = arith.constant 0 : index
      %c2_67 = arith.constant 2 : index
      %c0_68 = arith.constant 0 : index
      %c0_69 = arith.constant 0 : index
      %175 = vector.load %arg5[%c0_66, %c2_67, %c0_68, %c0_69] : memref<1x8x2x32xf32, #tpu.memory_space<vmem>>, vector<1x1x2x32xf32>
      %176 = vector.shape_cast %175 : vector<1x1x2x32xf32> to vector<2x32xf32>
      %177 = vector.shape_cast %174 : vector<2x32xf32> to vector<1x1x2x32xf32>
      tpu.vector_store %arg5[%c0_66, %c2_67, %c0_68, %c0_69], %177 {strides = array<i32>} : memref<1x8x2x32xf32, #tpu.memory_space<vmem>>, vector<1x1x2x32xf32>,
      %c0_70 = arith.constant 0 : index
      %c1 = arith.constant 1 : index
      %c0_71 = arith.constant 0 : index
      %c0_72 = arith.constant 0 : index
      %178 = vector.load %arg2[%c0_70, %c1, %c0_71, %c0_72] : memref<1x8x2x96xf32, #tpu.memory_space<vmem>>, vector<1x1x2x96xf32>
      %179 = vector.shape_cast %178 : vector<1x1x2x96xf32> to vector<2x96xf32>
      %cst_73 = arith.constant dense<0.000000e+00> : vector<2x96xf32>
      %180 = tpu.matmul %174, %4, %cst_73 {dimension_numbers = #tpu.dot_dimension_numbers<[1], [0], [0], [1], [0, 0, 1, 1], [], []>} : vector<2x32xf32>, vector<32x96xf32>, vector<2x96xf32> -> vector<2x96xf32>
      %181 = vector.extract_strided_slice %179 {offsets = [0, 0], sizes = [2, 64], strides = [1, 1]} : vector<2x96xf32> to vector<2x64xf32>
      %182 = vector.extract_strided_slice %180 {offsets = [0, 0], sizes = [2, 64], strides = [1, 1]} : vector<2x96xf32> to vector<2x64xf32>
      %183 = arith.addf %181, %182 : vector<2x64xf32>
      %184 = arith.negf %183 : vector<2x64xf32>
      %185 = math.exp %184 : vector<2x64xf32>
      %cst_74 = arith.constant 1.000000e+00 : f32
      %186 = vector.broadcast %cst_74 : f32 to vector<2x64xf32>
      %187 = arith.addf %186, %185 : vector<2x64xf32>
      %188 = arith.divf %186, %187 : vector<2x64xf32>
      %189 = vector.extract_strided_slice %188 {offsets = [0, 0], sizes = [2, 32], strides = [1, 1]} : vector<2x64xf32> to vector<2x32xf32>
      %190 = vector.extract_strided_slice %188 {offsets = [0, 32], sizes = [2, 32], strides = [1, 1]} : vector<2x64xf32> to vector<2x32xf32>
      %191 = vector.extract_strided_slice %179 {offsets = [0, 64], sizes = [2, 32], strides = [1, 1]} : vector<2x96xf32> to vector<2x32xf32>
      %192 = vector.extract_strided_slice %180 {offsets = [0, 64], sizes = [2, 32], strides = [1, 1]} : vector<2x96xf32> to vector<2x32xf32>
      %193 = arith.addf %192, %8 : vector<2x32xf32>
      %194 = arith.mulf %189, %193 : vector<2x32xf32>
      %195 = arith.addf %191, %194 : vector<2x32xf32>
      %196 = math.tanh %195 : vector<2x32xf32>
      %cst_75 = arith.constant 1.000000e+00 : f32
      %197 = vector.broadcast %cst_75 : f32 to vector<2x32xf32>
      %198 = arith.subf %197, %190 : vector<2x32xf32>
      %199 = arith.mulf %198, %196 : vector<2x32xf32>
      %200 = arith.mulf %190, %174 : vector<2x32xf32>
      %201 = arith.addf %199, %200 : vector<2x32xf32>
      %c0_76 = arith.constant 0 : index
      %c1_77 = arith.constant 1 : index
      %c0_78 = arith.constant 0 : index
      %c0_79 = arith.constant 0 : index
      %202 = vector.load %arg5[%c0_76, %c1_77, %c0_78, %c0_79] : memref<1x8x2x32xf32, #tpu.memory_space<vmem>>, vector<1x1x2x32xf32>
      %203 = vector.shape_cast %202 : vector<1x1x2x32xf32> to vector<2x32xf32>
      %204 = vector.shape_cast %201 : vector<2x32xf32> to vector<1x1x2x32xf32>
      tpu.vector_store %arg5[%c0_76, %c1_77, %c0_78, %c0_79], %204 {strides = array<i32>} : memref<1x8x2x32xf32, #tpu.memory_space<vmem>>, vector<1x1x2x32xf32>,
      %c0_80 = arith.constant 0 : index
      %c0_81 = arith.constant 0 : index
      %c0_82 = arith.constant 0 : index
      %c0_83 = arith.constant 0 : index
      %205 = vector.load %arg2[%c0_80, %c0_81, %c0_82, %c0_83] : memref<1x8x2x96xf32, #tpu.memory_space<vmem>>, vector<1x1x2x96xf32>
      %206 = vector.shape_cast %205 : vector<1x1x2x96xf32> to vector<2x96xf32>
      %cst_84 = arith.constant dense<0.000000e+00> : vector<2x96xf32>
      %207 = tpu.matmul %201, %4, %cst_84 {dimension_numbers = #tpu.dot_dimension_numbers<[1], [0], [0], [1], [0, 0, 1, 1], [], []>} : vector<2x32xf32>, vector<32x96xf32>, vector<2x96xf32> -> vector<2x96xf32>
      %208 = vector.extract_strided_slice %206 {offsets = [0, 0], sizes = [2, 64], strides = [1, 1]} : vector<2x96xf32> to vector<2x64xf32>
      %209 = vector.extract_strided_slice %207 {offsets = [0, 0], sizes = [2, 64], strides = [1, 1]} : vector<2x96xf32> to vector<2x64xf32>
      %210 = arith.addf %208, %209 : vector<2x64xf32>
      %211 = arith.negf %210 : vector<2x64xf32>
      %212 = math.exp %211 : vector<2x64xf32>
      %cst_85 = arith.constant 1.000000e+00 : f32
      %213 = vector.broadcast %cst_85 : f32 to vector<2x64xf32>
      %214 = arith.addf %213, %212 : vector<2x64xf32>
      %215 = arith.divf %213, %214 : vector<2x64xf32>
      %216 = vector.extract_strided_slice %215 {offsets = [0, 0], sizes = [2, 32], strides = [1, 1]} : vector<2x64xf32> to vector<2x32xf32>
      %217 = vector.extract_strided_slice %215 {offsets = [0, 32], sizes = [2, 32], strides = [1, 1]} : vector<2x64xf32> to vector<2x32xf32>
      %218 = vector.extract_strided_slice %206 {offsets = [0, 64], sizes = [2, 32], strides = [1, 1]} : vector<2x96xf32> to vector<2x32xf32>
      %219 = vector.extract_strided_slice %207 {offsets = [0, 64], sizes = [2, 32], strides = [1, 1]} : vector<2x96xf32> to vector<2x32xf32>
      %220 = arith.addf %219, %8 : vector<2x32xf32>
      %221 = arith.mulf %216, %220 : vector<2x32xf32>
      %222 = arith.addf %218, %221 : vector<2x32xf32>
      %223 = math.tanh %222 : vector<2x32xf32>
      %cst_86 = arith.constant 1.000000e+00 : f32
      %224 = vector.broadcast %cst_86 : f32 to vector<2x32xf32>
      %225 = arith.subf %224, %217 : vector<2x32xf32>
      %226 = arith.mulf %225, %223 : vector<2x32xf32>
      %227 = arith.mulf %217, %201 : vector<2x32xf32>
      %228 = arith.addf %226, %227 : vector<2x32xf32>
      %c0_87 = arith.constant 0 : index
      %c0_88 = arith.constant 0 : index
      %c0_89 = arith.constant 0 : index
      %c0_90 = arith.constant 0 : index
      %229 = vector.load %arg5[%c0_87, %c0_88, %c0_89, %c0_90] : memref<1x8x2x32xf32, #tpu.memory_space<vmem>>, vector<1x1x2x32xf32>
      %230 = vector.shape_cast %229 : vector<1x1x2x32xf32> to vector<2x32xf32>
      %231 = vector.shape_cast %228 : vector<2x32xf32> to vector<1x1x2x32xf32>
      tpu.vector_store %arg5[%c0_87, %c0_88, %c0_89, %c0_90], %231 {strides = array<i32>} : memref<1x8x2x32xf32, #tpu.memory_space<vmem>>, vector<1x1x2x32xf32>,
      %c0_91 = arith.constant 0 : index
      %c0_92 = arith.constant 0 : index
      %232 = vector.load %arg6[%c0_91, %c0_92] : memref<2x32xf32, #tpu.memory_space<vmem>>, vector<2x32xf32>
      tpu.vector_store %arg6[%c0_91, %c0_92], %228 {strides = array<i32>} : memref<2x32xf32, #tpu.memory_space<vmem>>, vector<2x32xf32>,
    } else {
    }
    return
  }
  func.func @transform_0(%arg0: i32, %arg1: i32) -> (i32, i32, i32, i32) {
    %c2_i32 = arith.constant 2 : i32
    %0 = arith.muli %c2_i32, %arg1 : i32
    %c0_i32 = arith.constant 0 : i32
    %1 = arith.subi %c0_i32, %0 : i32
    %2 = arith.muli %arg0, %1 : i32
    %3 = arith.addi %arg1, %2 : i32
    %c0_i32_0 = arith.constant 0 : i32
    %c0_i32_1 = arith.constant 0 : i32
    %c0_i32_2 = arith.constant 0 : i32
    return %arg0, %3, %c0_i32_0, %c0_i32_1 : i32, i32, i32, i32
  }
  func.func @transform_1(%arg0: i32, %arg1: i32) -> (i32, i32, i32) {
    %c0_i32 = arith.constant 0 : i32
    %c0_i32_0 = arith.constant 0 : i32
    %c0_i32_1 = arith.constant 0 : i32
    return %arg0, %c0_i32, %c0_i32_0 : i32, i32, i32
  }
  func.func @transform_2(%arg0: i32, %arg1: i32) -> (i32, i32, i32) {
    %c0_i32 = arith.constant 0 : i32
    %c0_i32_0 = arith.constant 0 : i32
    %c0_i32_1 = arith.constant 0 : i32
    return %arg0, %c0_i32, %c0_i32_0 : i32, i32, i32
  }
  func.func @transform_3(%arg0: i32, %arg1: i32) -> (i32, i32, i32, i32) {
    %c2_i32 = arith.constant 2 : i32
    %0 = arith.muli %c2_i32, %arg1 : i32
    %c0_i32 = arith.constant 0 : i32
    %1 = arith.subi %c0_i32, %0 : i32
    %2 = arith.muli %arg0, %1 : i32
    %3 = arith.addi %arg1, %2 : i32
    %c0_i32_0 = arith.constant 0 : i32
    %c0_i32_1 = arith.constant 0 : i32
    %c0_i32_2 = arith.constant 0 : i32
    return %arg0, %3, %c0_i32_0, %c0_i32_1 : i32, i32, i32, i32
  }
}

</mosaic_0001>

<llo_original>
// kernel: tpu_custom_call.1
$region0: #{tpu_custom_call.1}
  #allocation0 [shape = 'u32[]', space=smem, size = 0x4, offset = 0x4, fixed_abs, tag = 'smem constant byte address 0x4 - core index']
  #allocation1 [shape = 'u32[72,128]{1,0:T(1,128)}', space=vmem, size = 0x9000, scoped, tag = 'internal scratch']
  #allocation2 [shape = 'f32[2,32]{1,0:T(2,128)}', space=vmem, size = 0x400, scoped, tag = 'scratch operand']
  %s0 = inlined_call_operand.hbm [shape: f32[2,8,2,96], index: 0, kind: input, shape index: {}]
  %s1 = inlined_call_operand.hbm [shape: f32[2,32,96], index: 1, kind: input, shape index: {}]
  %s2 = inlined_call_operand.hbm [shape: f32[2,1,32], index: 2, kind: input, shape index: {}]
  %s3 = inlined_call_operand.hbm [shape: f32[2,8,2,32], index: 3, kind: output, shape index: {}]
  %s4 = sld [smem:[#allocation0]]
  $region69: #{tpu_custom_call.1} parent=0
    _
  %s6 = ssub.s32 1, %s4
  %s7 = scalar_select 0, %s6, %s4
  $region1: #{tpu_custom_call.1} parent=0
    #allocation3 [shape = 'u8[16384]{0}', space=vmem, size = 0x4000, scoped, tag = 'input window, operand 0']
    #allocation4 [shape = 's32[2]{0}', space=sflag, size = 0x8, scoped, tag = 'scoped memory for tpu_custom_call.1']
    #allocation5 [shape = 's32[2]{0}', space=sflag, size = 0x8, scoped, tag = 'scoped memory for tpu_custom_call.1']
    #allocation6 [shape = 'u8[32768]{0}', space=vmem, size = 0x8000, scoped, tag = 'input window, operand 1']
    #allocation7 [shape = 's32[2]{0}', space=sflag, size = 0x8, scoped, tag = 'scoped memory for tpu_custom_call.1']
    #allocation8 [shape = 'u8[1024]{0}', space=vmem, size = 0x400, scoped, tag = 'input window, operand 2']
    #allocation9 [shape = 'u8[16384]{0}', space=vmem, size = 0x4000, scoped, tag = 'output window, operand 0']
    %8 = vsyncpa [#allocation4], 0
    %s9 = scalar_lea.sflag [#allocation4], 1
    %10 = vsyncpa %s9, 0
    %11 = vsyncpa [#allocation7], 0
    %s12 = scalar_lea.sflag [#allocation7], 1
    %13 = vsyncpa %s12, 0
    %14 = vsyncpa [#allocation5], 0
    %s15 = scalar_lea.sflag [#allocation5], 1
    %16 = vsyncpa %s15, 0
    loop: start=0, step=1, limit=4
    $region2: #{tpu_custom_call.1} parent=1 // loop_pre_header
      _
    $region3: #{tpu_custom_call.1} parent=1 // loop_header
      %s18 = sphi 0, %s22
      %p19 = scmp.ge.s32.totalorder %s18, 4
      %s25 = sphi 0, %s37
      %s26 = sphi 0, %s33
      %s27 = sphi 0, %s25
      %s28 = sphi 0, %s26
      %s29 = sphi 0, %s27
      %s30 = sphi 0, %s28
      %s50 = sphi 0, %s52
      %s53 = sphi 0, %s50
      %s54 = sphi 0, %s53
      %s70 = sphi 0, %s54
      %s76 = sphi 0, %s78
      %s79 = sphi 0, %s76
      %s80 = sphi 0, %s79
      %s96 = sphi 0, %s80
      %s102 = sphi 0, %s104
      %s105 = sphi 0, %s102
      %s106 = sphi 0, %s105
      %s122 = sphi 0, %s106
      %s138 = sphi 0, %s140
      %s141 = sphi 0, %s138
      %s142 = sphi 0, %s141
      %s158 = sphi 0, %s142
    $region4: #{tpu_custom_call.1} parent=1 // loop_header_branch
      %21 = sbr.rel (%p19) target = $region8
    $region5: #{tpu_custom_call.1} parent=1 // loop_body
      %s23 = ssub.s32 %s18, 1
      %s24 = ssub.s32 %s18, 2
      %s31 = sadd.s32 1, %s26
      %p32 = scmp.ge.s32.totalorder %s31, 1
      %s33 = scalar_select %p32, 0, %s31
      %s34 = sadd.s32 1, %s25
      %s35 = scalar_select %p32, %s34, %s25
      %p36 = scmp.ge.s32.totalorder %s35, 2
      %s37 = scalar_select %p36, 0, %s35
      %s38 = smul.u32 %s26, 2
      %s39 = ssub.s32 0, %s38
      %s40 = smul.u32 %s25, %s39
      %s41 = sadd.s32 %s26, %s40
      %s42 = smul.u32 %s33, 2
      %s43 = ssub.s32 0, %s42
      %s44 = smul.u32 %s37, %s43
      %s45 = sadd.s32 %s33, %s44
      %s46 = ssub.s32 %s25, %s37
      %s47 = ssub.s32 %s41, %s45
      %s48 = sor.u32 %s46, %s47
      %p49 = scmp.eq.s32.totalorder %s48, 0
      %s51 = sadd.s32 %s50, 1
      %s52 = scalar_select %p49, %s50, %s51
      %p55 = pneg %p49
      %p56 = scmp.eq.s32.totalorder %s18, 1
      %p57 = por %p55, %p56
      %p58 = scmp.ne.s32.totalorder %s50, %s53
      %p59 = scmp.eq.s32.totalorder %s18, 0
      %p60 = por %p58, %p59
      %p61 = scmp.ne.s32.totalorder %s50, %s53
      %p62 = scmp.eq.s32.totalorder %s23, 1
      %p63 = por %p61, %p62
      %p64 = scmp.ne.s32.totalorder %s53, %s54
      %p65 = scmp.eq.s32.totalorder %s23, 0
      %p66 = por %p64, %p65
      %p67 = scmp.ne.s32.totalorder %s53, %s54
      %p68 = scmp.eq.s32.totalorder %s24, 1
      %p69 = por %p67, %p68
      %p71 = scmp.ne.s32.totalorder %s54, %s70
      %p72 = scmp.eq.s32.totalorder %s24, 0
      %p73 = por %p71, %p72
      %s74 = ssub.s32 %s25, %s37
      %p75 = scmp.eq.s32.totalorder %s74, 0
      %s77 = sadd.s32 %s76, 1
      %s78 = scalar_select %p75, %s76, %s77
      %p81 = pneg %p75
      %p82 = scmp.eq.s32.totalorder %s18, 1
      %p83 = por %p81, %p82
      %p84 = scmp.ne.s32.totalorder %s76, %s79
      %p85 = scmp.eq.s32.totalorder %s18, 0
      %p86 = por %p84, %p85
      %p87 = scmp.ne.s32.totalorder %s76, %s79
      %p88 = scmp.eq.s32.totalorder %s23, 1
      %p89 = por %p87, %p88
      %p90 = scmp.ne.s32.totalorder %s79, %s80
      %p91 = scmp.eq.s32.totalorder %s23, 0
      %p92 = por %p90, %p91
      %p93 = scmp.ne.s32.totalorder %s79, %s80
      %p94 = scmp.eq.s32.totalorder %s24, 1
      %p95 = por %p93, %p94
      %p97 = scmp.ne.s32.totalorder %s80, %s96
      %p98 = scmp.eq.s32.totalorder %s24, 0
      %p99 = por %p97, %p98
      %s100 = ssub.s32 %s25, %s37
      %p101 = scmp.eq.s32.totalorder %s100, 0
      %s103 = sadd.s32 %s102, 1
      %s104 = scalar_select %p101, %s102, %s103
      %p107 = pneg %p101
      %p108 = scmp.eq.s32.totalorder %s18, 1
      %p109 = por %p107, %p108
      %p110 = scmp.ne.s32.totalorder %s102, %s105
      %p111 = scmp.eq.s32.totalorder %s18, 0
      %p112 = por %p110, %p111
      %p113 = scmp.ne.s32.totalorder %s102, %s105
      %p114 = scmp.eq.s32.totalorder %s23, 1
      %p115 = por %p113, %p114
      %p116 = scmp.ne.s32.totalorder %s105, %s106
      %p117 = scmp.eq.s32.totalorder %s23, 0
      %p118 = por %p116, %p117
      %p119 = scmp.ne.s32.totalorder %s105, %s106
      %p120 = scmp.eq.s32.totalorder %s24, 1
      %p121 = por %p119, %p120
      %p123 = scmp.ne.s32.totalorder %s106, %s122
      %p124 = scmp.eq.s32.totalorder %s24, 0
      %p125 = por %p123, %p124
      %s126 = smul.u32 %s26, 2
      %s127 = ssub.s32 0, %s126
      %s128 = smul.u32 %s25, %s127
      %s129 = sadd.s32 %s26, %s128
      %s130 = smul.u32 %s33, 2
      %s131 = ssub.s32 0, %s130
      %s132 = smul.u32 %s37, %s131
      %s133 = sadd.s32 %s33, %s132
      %s134 = ssub.s32 %s25, %s37
      %s135 = ssub.s32 %s129, %s133
      %s136 = sor.u32 %s134, %s135
      %p137 = scmp.eq.s32.totalorder %s136, 0
      %s139 = sadd.s32 %s138, 1
      %s140 = scalar_select %p137, %s138, %s139
      %p143 = pneg %p137
      %p144 = scmp.eq.s32.totalorder %s18, 1
      %p145 = por %p143, %p144
      %p146 = scmp.ne.s32.totalorder %s138, %s141
      %p147 = scmp.eq.s32.totalorder %s18, 0
      %p148 = por %p146, %p147
      %p149 = scmp.ne.s32.totalorder %s138, %s141
      %p150 = scmp.eq.s32.totalorder %s23, 1
      %p151 = por %p149, %p150
      %p152 = scmp.ne.s32.totalorder %s141, %s142
      %p153 = scmp.eq.s32.totalorder %s23, 0
      %p154 = por %p152, %p153
      %p155 = scmp.ne.s32.totalorder %s141, %s142
      %p156 = scmp.eq.s32.totalorder %s24, 1
      %p157 = por %p155, %p156
      %p159 = scmp.ne.s32.totalorder %s142, %s158
      %p160 = scmp.eq.s32.totalorder %s24, 0
      %p161 = por %p159, %p160
      %p162 = scmp.le.s32.totalorder 1, %s18
      %p163 = scmp.lt.s32.totalorder %s18, 3
      %p164 = pnand %p162, %p163
      %p165 = pneg %p164
      // Predicated region
      $region9: #{tpu_custom_call.1} parent=5 // pred_check
        _
      $region10: #{tpu_custom_call.1} parent=5 // pred_check_branch
        %167 = sbr.rel (%p164) target = $region12
      $region11: #{tpu_custom_call.1} parent=5 // pred_region
        %s168 = ssub.s32 %s18, 1
      $region12: #{tpu_custom_call.1} parent=5 // pred_fallthru
        _
      %p169 = scmp.lt.s32.totalorder %s18, 2
      // Predicated region
      $region13: #{tpu_custom_call.1} parent=5 // pred_check
        %p170 = pneg %p169
      $region14: #{tpu_custom_call.1} parent=5 // pred_check_branch
        %172 = sbr.rel (%p170) target = $region16
      $region15: #{tpu_custom_call.1} parent=5 // pred_region
        // Predicated region
        $region17: #{tpu_custom_call.1} parent=15 // pred_check
          %p173 = pneg %p60
        $region18: #{tpu_custom_call.1} parent=15 // pred_check_branch
          %175 = sbr.rel (%p173) target = $region20
        $region19: #{tpu_custom_call.1} parent=15 // pred_region
          %s176 = sand.u32 %s50, 1
          %s177 = scalar_lea.sflag [#allocation4], %s176
          %s178 = sand.u32 %s50, 1
          %s179 = smul.addr %s178, 16
          %s180 = scalar_lea.vmem [#allocation3], %s179
          %s181 = smul.u32 %s26, 2
          %s182 = ssub.s32 0, %s181
          %s183 = smul.u32 %s25, %s182
          %s184 = sadd.s32 %s26, %s183
          %s185 = smul.u32 8, %s184
          %187 = vsyncadd %s177, 0
          %s188 = smul.addr %s25, 8
          %s189 = sadd.s32 %s185, %s188
          %s190 = smul.addr %s189, 2
          %s191 = scalar_lea.hbm %s0, %s190
          %s192 = sshll.u32 %s191, 4
          %s193 = int_to_ptr.hbm [resolvable:$true] %s192
          %s194 = sshll.u32 %s180, 4
          %s195 = int_to_ptr.vmem [resolvable:$true] %s194
          %200 = dma.hbm_to_vmem [thread:$0]  %s193, 256, %s195, %s177, 32, 32, 2
        $region20: #{tpu_custom_call.1} parent=15 // pred_fallthru
          _
        // Predicated region
        $region21: #{tpu_custom_call.1} parent=15 // pred_check
          %p201 = pneg %p86
        $region22: #{tpu_custom_call.1} parent=15 // pred_check_branch
          %203 = sbr.rel (%p201) target = $region24
        $region23: #{tpu_custom_call.1} parent=15 // pred_region
          %s204 = sand.u32 %s18, 1
          %s205 = scalar_lea.sflag [#allocation7], %s204
          %s206 = sand.u32 %s76, 1
          %s207 = smul.addr %s206, 32
          %s208 = scalar_lea.vmem [#allocation6], %s207
          %210 = vsyncadd %s205, 0
          %s211 = smul.addr %s25, 4
          %s212 = smul.addr %s211, 8
          %s213 = scalar_lea.hbm %s1, %s212
          %s214 = sshll.u32 %s213, 4
          %s215 = int_to_ptr.hbm [resolvable:$true] %s214
          %s216 = sshll.u32 %s208, 4
          %s217 = int_to_ptr.vmem [resolvable:$true] %s216
          %222 = dma.hbm_to_vmem [thread:$0]  %s215, 512, %s217, %s205, 128, 128, 8
        $region24: #{tpu_custom_call.1} parent=15 // pred_fallthru
          _
        // Predicated region
        $region25: #{tpu_custom_call.1} parent=15 // pred_check
          %p223 = pneg %p112
        $region26: #{tpu_custom_call.1} parent=15 // pred_check_branch
          %225 = sbr.rel (%p223) target = $region28
        $region27: #{tpu_custom_call.1} parent=15 // pred_region
          %s226 = sand.u32 %s18, 1
          %s227 = scalar_lea.sflag [#allocation7], %s226
          %s228 = sand.u32 %s102, 1
          %s229 = scalar_lea.vmem [#allocation8], %s228
          %231 = vsyncadd %s227, 0
          %s232 = scalar_lea.hbm %s2, %s25
          %s234 = sshll.u32 %s232, 4
          %s235 = int_to_ptr.hbm [resolvable:$true] %s234
          %s236 = sshll.u32 %s229, 4
          %s237 = int_to_ptr.vmem [resolvable:$true] %s236
          %239 = dma.hbm_to_vmem [thread:$0]  %s235, 16, %s237, %s227
        $region28: #{tpu_custom_call.1} parent=15 // pred_fallthru
          _
      $region16: #{tpu_custom_call.1} parent=5 // pred_fallthru
        _
      %p240 = scmp.le.s32.totalorder 1, %s18
      %p241 = scmp.lt.s32.totalorder %s18, 3
      %p242 = pnand %p240, %p241
      %p243 = pneg %p242
      // Predicated region
      $region29: #{tpu_custom_call.1} parent=5 // pred_check
        _
      $region30: #{tpu_custom_call.1} parent=5 // pred_check_branch
        %245 = sbr.rel (%p242) target = $region32
      $region31: #{tpu_custom_call.1} parent=5 // pred_region
        %s246 = ssub.s32 %s18, 1
        %s247 = sand.u32 %s53, 1
        %s248 = scalar_lea.sflag [#allocation4], %s247
        %s249 = sand.u32 %s53, 1
        %s250 = smul.addr %s249, 16
        %s251 = scalar_lea.vmem [#allocation3], %s250
        // Predicated region
        $region33: #{tpu_custom_call.1} parent=31 // pred_check
          %p252 = pneg %p66
        $region34: #{tpu_custom_call.1} parent=31 // pred_check_branch
          %254 = sbr.rel (%p252) target = $region36
        $region35: #{tpu_custom_call.1} parent=31 // pred_region
          %256 = dma.done %s248, 256
        $region36: #{tpu_custom_call.1} parent=31 // pred_fallthru
          _
        %s257 = sand.u32 %s23, 1
        %s258 = scalar_lea.sflag [#allocation7], %s257
        %s259 = sand.u32 %s79, 1
        %s260 = smul.addr %s259, 32
        %s261 = scalar_lea.vmem [#allocation6], %s260
        // Predicated region
        $region37: #{tpu_custom_call.1} parent=31 // pred_check
          %p262 = pneg %p92
        $region38: #{tpu_custom_call.1} parent=31 // pred_check_branch
          %264 = sbr.rel (%p262) target = $region40
        $region39: #{tpu_custom_call.1} parent=31 // pred_region
          %266 = dma.done %s258, 512
        $region40: #{tpu_custom_call.1} parent=31 // pred_fallthru
          _
        %s267 = sand.u32 %s23, 1
        %s268 = scalar_lea.sflag [#allocation7], %s267
        %s269 = sand.u32 %s105, 1
        %s270 = scalar_lea.vmem [#allocation8], %s269
        // Predicated region
        $region41: #{tpu_custom_call.1} parent=31 // pred_check
          %p271 = pneg %p118
        $region42: #{tpu_custom_call.1} parent=31 // pred_check_branch
          %273 = sbr.rel (%p271) target = $region44
        $region43: #{tpu_custom_call.1} parent=31 // pred_region
          %275 = dma.done %s268, 16
        $region44: #{tpu_custom_call.1} parent=31 // pred_fallthru
          _
        %s276 = sand.u32 %s53, 1
        %s277 = scalar_lea.sflag [#allocation4], %s276
        %s278 = sand.u32 %s53, 1
        %s279 = smul.addr %s278, 16
        %s280 = scalar_lea.vmem [#allocation3], %s279
        %p281 = pneg %p66
        %p282 = pneg %p63
        %s283 = sand.u32 %s23, 1
        %s284 = scalar_lea.sflag [#allocation7], %s283
        %s285 = sand.u32 %s79, 1
        %s286 = smul.addr %s285, 32
        %s287 = scalar_lea.vmem [#allocation6], %s286
        %p288 = pneg %p92
        %p289 = pneg %p89
        %s290 = sand.u32 %s23, 1
        %s291 = scalar_lea.sflag [#allocation7], %s290
        %s292 = sand.u32 %s105, 1
        %s293 = scalar_lea.vmem [#allocation8], %s292
        %p294 = pneg %p118
        %p295 = pneg %p115
        %p296 = pneg %p154
        %p297 = pneg %p151
        %s298 = sand.u32 %s141, 1
        %s299 = scalar_lea.sflag [#allocation5], %s298
        %s300 = sand.u32 %s141, 1
        %s301 = smul.addr %s300, 16
        %s302 = scalar_lea.vmem [#allocation9], %s301
        %s303 = smul.u32 %s28, 2
        %s304 = ssub.s32 0, %s303
        %s305 = smul.u32 %s27, %s304
        %s306 = sadd.s32 %s28, %s305
        %s307 = smul.u32 8, %s306
        %s308 = smul.u32 %s28, 2
        %s309 = ssub.s32 0, %s308
        %s310 = smul.u32 %s27, %s309
        %s311 = sadd.s32 %s28, %s310
        %s312 = smul.u32 8, %s311
        %p313 = scmp.eq.s32.totalorder %s28, 0
        // Predicated region
        $region45: #{tpu_custom_call.1} parent=31 // pred_check
          %p314 = pneg %p313
        $region46: #{tpu_custom_call.1} parent=31 // pred_check_branch
          %316 = sbr.rel (%p314) target = $region48
        $region47: #{tpu_custom_call.1} parent=31 // pred_region
          %vm317 = vcmask 254976
          %318 = vst.msk [vmem:[#allocation2] sm:$0x3] %vm317, 0.0
        $region48: #{tpu_custom_call.1} parent=31 // pred_fallthru
          _
        %v319 = vld [vmem:[%s261] sm:$0xff]
        %v320 = vld [vmem:[%s261 + $0x8] sm:$0xff]
        %v321 = vld [vmem:[%s261 + $0x10] sm:$0xff]
        %v322 = vld [vmem:[%s261 + $0x18] sm:$0xff]
        %v323 = vld [vmem:[%s270] sm:$0x1]
        %v325 = vperm.slane %v323, 0
        %p326 = scmp.eq.s32.totalorder %s27, 0
        // Predicated region
        $region49: #{tpu_custom_call.1} parent=31 // pred_check
          %p327 = pneg %p326
        $region50: #{tpu_custom_call.1} parent=31 // pred_check_branch
          %329 = sbr.rel (%p327) target = $region52
        $region51: #{tpu_custom_call.1} parent=31 // pred_region
          %v330 = vld [vmem:[#allocation2] sm:$0x3]
          %v331 = vld [vmem:[%s251] sm:$0x3]
          %vm332 = vcmask 261120
          %v334 = vsel %vm332, %v330, 0
          %336 = vmatpush.msra.mxu0 0.0
          %337 = vmatpush.msra.mxu0 0.0
          %338 = vmatpush.msra.mxu0 0.0
          %339 = vmatpush.msra.mxu0 0.0
          %340 = vmatpush.msra.mxu0 0.0
          %341 = vmatpush.msra.mxu0 0.0
          %342 = vmatpush.msra.mxu0 0.0
          %343 = vmatpush.msra.mxu0 0.0
          %344 = vmatpush.msra.mxu0 0.0
          %345 = vmatpush.msra.mxu0 0.0
          %346 = vmatpush.msra.mxu0 0.0
          %347 = vmatpush.msra.mxu0 0.0
          %348 = vmatpush.msra.mxu0 %v322
          %349 = vmatpush.msra.mxu0 %v321
          %350 = vmatpush.msra.mxu0 %v320
          %351 = vmatpush.msra.mxu0 %v319
          %352 = vmatmul.f32.gmra.mxu0 %v334
          %v353 = vpop.f32.mrf.mxu0
          %v354 = vadd.f32 0.0, %v353
          %355 = vdwg.mxu0
          %v356 = vadd.f32 %v331, %v354
          %v357 = vxor.u32 %v356, 2147483648
          %v358 = vmul.f32 %v357, 1.442695
          %v359 = vpow.pop %v358
          %v360 = vadd.f32 %v359, 1.0
          %v361 = vrcp.pop %v360
          %v362 = vmul.f32 %v360, %v361
          %v363 = vsub.f32 1.0, %v362
          %v364 = vmul.f32 %v361, %v363
          %v365 = vadd.f32 %v361, %v364
          %vm366 = vweird.f32 %v360
          %vm367 = vweird.f32 %v361
          %vm368 = vmor %vm366, %vm367
          %v369 = vsel %vm368, %v361, %v365
          %v370 = vand.u32 2147483647, %v360
          %vm371 = vcmp.eq.f32.partialorder %v370, 8.507059e+37
          %v372 = vand.u32 %v360, 2147483648
          %v373 = vor.u32 1.1754944e-38, %v372
          %v374 = vsel %vm371, %v373, %v369
          %v375 = vmul.f32 1.0, %v374
          %376 = vrot.lane.b32.xlu0 %v325, 64
          %v377 = vpop.permute.xlu0 %376
          %v379 = vadd.f32 %v354, %v377
          %381 = vrot.lane.b32.xlu0 %v379, 64
          %v382 = vpop.permute.xlu0 %381
          %v384 = vmul.f32 %v375, %v382
          %386 = vrot.lane.b32.xlu0 %v384, 64
          %v387 = vpop.permute.xlu0 %386
          %v389 = vadd.f32 %v331, %v387
          %v390 = vtanh.pop %v389
          %v391 = vsub.f32 1.0, %v375
          %393 = vrot.lane.b32.xlu0 %v390, 96
          %v394 = vpop.permute.xlu0 %393
          %v396 = vmul.f32 %v391, %v394
          %397 = vrot.lane.b32.xlu0 %v330, 32
          %v398 = vpop.permute.xlu0 %397
          %v400 = vmul.f32 %v375, %v398
          %v401 = vadd.f32 %v396, %v400
          %403 = vrot.lane.b32.xlu0 %v401, 96
          %v404 = vpop.permute.xlu0 %403
          %vm406 = vcmask 254976
          %407 = vst.msk [vmem:[%s302] sm:$0x3] %vm406, %v404
          %s408 = scalar_lea.vmem %s251, 2 [#allocation3]
          %v409 = vld [vmem:[%s408] sm:$0x3]
          %v410 = vsel %vm332, %v404, 0
          %412 = vmatpush.msra.mxu0 0.0
          %413 = vmatpush.msra.mxu0 0.0
          %414 = vmatpush.msra.mxu0 0.0
          %415 = vmatpush.msra.mxu0 0.0
          %416 = vmatpush.msra.mxu0 0.0
          %417 = vmatpush.msra.mxu0 0.0
          %418 = vmatpush.msra.mxu0 0.0
          %419 = vmatpush.msra.mxu0 0.0
          %420 = vmatpush.msra.mxu0 0.0
          %421 = vmatpush.msra.mxu0 0.0
          %422 = vmatpush.msra.mxu0 0.0
          %423 = vmatpush.msra.mxu0 0.0
          %424 = vmatpush.msra.mxu0 %v322
          %425 = vmatpush.msra.mxu0 %v321
          %426 = vmatpush.msra.mxu0 %v320
          %427 = vmatpush.msra.mxu0 %v319
          %428 = vmatmul.f32.gmra.mxu0 %v410
          %v429 = vpop.f32.mrf.mxu0
          %v430 = vadd.f32 0.0, %v429
          %431 = vdwg.mxu0
          %v432 = vadd.f32 %v409, %v430
          %v433 = vxor.u32 %v432, 2147483648
          %v434 = vmul.f32 %v433, 1.442695
          %v435 = vpow.pop %v434
          %v436 = vadd.f32 %v435, 1.0
          %v437 = vrcp.pop %v436
          %v438 = vmul.f32 %v436, %v437
          %v439 = vsub.f32 1.0, %v438
          %v440 = vmul.f32 %v437, %v439
          %v441 = vadd.f32 %v437, %v440
          %vm442 = vweird.f32 %v436
          %vm443 = vweird.f32 %v437
          %vm444 = vmor %vm442, %vm443
          %v445 = vsel %vm444, %v437, %v441
          %v446 = vand.u32 2147483647, %v436
          %vm447 = vcmp.eq.f32.partialorder %v446, 8.507059e+37
          %v448 = vand.u32 %v436, 2147483648
          %v449 = vor.u32 1.1754944e-38, %v448
          %v450 = vsel %vm447, %v449, %v445
          %v451 = vmul.f32 1.0, %v450
          %v452 = vadd.f32 %v430, %v377
          %454 = vrot.lane.b32.xlu0 %v452, 64
          %v455 = vpop.permute.xlu0 %454
          %v457 = vmul.f32 %v451, %v455
          %459 = vrot.lane.b32.xlu0 %v457, 64
          %v460 = vpop.permute.xlu0 %459
          %v462 = vadd.f32 %v409, %v460
          %v463 = vtanh.pop %v462
          %v464 = vsub.f32 1.0, %v451
          %466 = vrot.lane.b32.xlu0 %v463, 96
          %v467 = vpop.permute.xlu0 %466
          %v469 = vmul.f32 %v464, %v467
          %v470 = vmul.f32 %v451, %v401
          %v471 = vadd.f32 %v469, %v470
          %473 = vrot.lane.b32.xlu0 %v471, 96
          %v474 = vpop.permute.xlu0 %473
          %s476 = scalar_lea.vmem %s302, 2 [#allocation9]
          %477 = vst.msk [vmem:[%s476] sm:$0x3] %vm406, %v474
          %s478 = scalar_lea.vmem %s251, 4 [#allocation3]
          %v479 = vld [vmem:[%s478] sm:$0x3]
          %v480 = vsel %vm332, %v474, 0
          %482 = vmatpush.msra.mxu0 0.0
          %483 = vmatpush.msra.mxu0 0.0
          %484 = vmatpush.msra.mxu0 0.0
          %485 = vmatpush.msra.mxu0 0.0
          %486 = vmatpush.msra.mxu0 0.0
          %487 = vmatpush.msra.mxu0 0.0
          %488 = vmatpush.msra.mxu0 0.0
          %489 = vmatpush.msra.mxu0 0.0
          %490 = vmatpush.msra.mxu0 0.0
          %491 = vmatpush.msra.mxu0 0.0
          %492 = vmatpush.msra.mxu0 0.0
          %493 = vmatpush.msra.mxu0 0.0
          %494 = vmatpush.msra.mxu0 %v322
          %495 = vmatpush.msra.mxu0 %v321
          %496 = vmatpush.msra.mxu0 %v320
          %497 = vmatpush.msra.mxu0 %v319
          %498 = vmatmul.f32.gmra.mxu0 %v480
          %v499 = vpop.f32.mrf.mxu0
          %v500 = vadd.f32 0.0, %v499
          %501 = vdwg.mxu0
          %v502 = vadd.f32 %v479, %v500
          %v503 = vxor.u32 %v502, 2147483648
          %v504 = vmul.f32 %v503, 1.442695
          %v505 = vpow.pop %v504
          %v506 = vadd.f32 %v505, 1.0
          %v507 = vrcp.pop %v506
          %v508 = vmul.f32 %v506, %v507
          %v509 = vsub.f32 1.0, %v508
          %v510 = vmul.f32 %v507, %v509
          %v511 = vadd.f32 %v507, %v510
          %vm512 = vweird.f32 %v506
          %vm513 = vweird.f32 %v507
          %vm514 = vmor %vm512, %vm513
          %v515 = vsel %vm514, %v507, %v511
          %v516 = vand.u32 2147483647, %v506
          %vm517 = vcmp.eq.f32.partialorder %v516, 8.507059e+37
          %v518 = vand.u32 %v506, 2147483648
          %v519 = vor.u32 1.1754944e-38, %v518
          %v520 = vsel %vm517, %v519, %v515
          %v521 = vmul.f32 1.0, %v520
          %v522 = vadd.f32 %v500, %v377
          %524 = vrot.lane.b32.xlu0 %v522, 64
          %v525 = vpop.permute.xlu0 %524
          %v527 = vmul.f32 %v521, %v525
          %529 = vrot.lane.b32.xlu0 %v527, 64
          %v530 = vpop.permute.xlu0 %529
          %v532 = vadd.f32 %v479, %v530
          %v533 = vtanh.pop %v532
          %v534 = vsub.f32 1.0, %v521
          %536 = vrot.lane.b32.xlu0 %v533, 96
          %v537 = vpop.permute.xlu0 %536
          %v539 = vmul.f32 %v534, %v537
          %v540 = vmul.f32 %v521, %v471
          %v541 = vadd.f32 %v539, %v540
          %543 = vrot.lane.b32.xlu0 %v541, 96
          %v544 = vpop.permute.xlu0 %543
          %s546 = scalar_lea.vmem %s302, 4 [#allocation9]
          %547 = vst.msk [vmem:[%s546] sm:$0x3] %vm406, %v544
          %s548 = scalar_lea.vmem %s251, 6 [#allocation3]
          %v549 = vld [vmem:[%s548] sm:$0x3]
          %v550 = vsel %vm332, %v544, 0
          %552 = vmatpush.msra.mxu0 0.0
          %553 = vmatpush.msra.mxu0 0.0
          %554 = vmatpush.msra.mxu0 0.0
          %555 = vmatpush.msra.mxu0 0.0
          %556 = vmatpush.msra.mxu0 0.0
          %557 = vmatpush.msra.mxu0 0.0
          %558 = vmatpush.msra.mxu0 0.0
          %559 = vmatpush.msra.mxu0 0.0
          %560 = vmatpush.msra.mxu0 0.0
          %561 = vmatpush.msra.mxu0 0.0
          %562 = vmatpush.msra.mxu0 0.0
          %563 = vmatpush.msra.mxu0 0.0
          %564 = vmatpush.msra.mxu0 %v322
          %565 = vmatpush.msra.mxu0 %v321
          %566 = vmatpush.msra.mxu0 %v320
          %567 = vmatpush.msra.mxu0 %v319
          %568 = vmatmul.f32.gmra.mxu0 %v550
          %v569 = vpop.f32.mrf.mxu0
          %v570 = vadd.f32 0.0, %v569
          %571 = vdwg.mxu0
          %v572 = vadd.f32 %v549, %v570
          %v573 = vxor.u32 %v572, 2147483648
          %v574 = vmul.f32 %v573, 1.442695
          %v575 = vpow.pop %v574
          %v576 = vadd.f32 %v575, 1.0
          %v577 = vrcp.pop %v576
          %v578 = vmul.f32 %v576, %v577
          %v579 = vsub.f32 1.0, %v578
          %v580 = vmul.f32 %v577, %v579
          %v581 = vadd.f32 %v577, %v580
          %vm582 = vweird.f32 %v576
          %vm583 = vweird.f32 %v577
          %vm584 = vmor %vm582, %vm583
          %v585 = vsel %vm584, %v577, %v581
          %v586 = vand.u32 2147483647, %v576
          %vm587 = vcmp.eq.f32.partialorder %v586, 8.507059e+37
          %v588 = vand.u32 %v576, 2147483648
          %v589 = vor.u32 1.1754944e-38, %v588
          %v590 = vsel %vm587, %v589, %v585
          %v591 = vmul.f32 1.0, %v590
          %v592 = vadd.f32 %v570, %v377
          %594 = vrot.lane.b32.xlu0 %v592, 64
          %v595 = vpop.permute.xlu0 %594
          %v597 = vmul.f32 %v591, %v595
          %599 = vrot.lane.b32.xlu0 %v597, 64
          %v600 = vpop.permute.xlu0 %599
          %v602 = vadd.f32 %v549, %v600
          %v603 = vtanh.pop %v602
          %v604 = vsub.f32 1.0, %v591
          %606 = vrot.lane.b32.xlu0 %v603, 96
          %v607 = vpop.permute.xlu0 %606
          %v609 = vmul.f32 %v604, %v607
          %v610 = vmul.f32 %v591, %v541
          %v611 = vadd.f32 %v609, %v610
          %613 = vrot.lane.b32.xlu0 %v611, 96
          %v614 = vpop.permute.xlu0 %613
          %s616 = scalar_lea.vmem %s302, 6 [#allocation9]
          %617 = vst.msk [vmem:[%s616] sm:$0x3] %vm406, %v614
          %s618 = scalar_lea.vmem %s251, 8 [#allocation3]
          %v619 = vld [vmem:[%s618] sm:$0x3]
          %v620 = vsel %vm332, %v614, 0
          %622 = vmatpush.msra.mxu0 0.0
          %623 = vmatpush.msra.mxu0 0.0
          %624 = vmatpush.msra.mxu0 0.0
          %625 = vmatpush.msra.mxu0 0.0
          %626 = vmatpush.msra.mxu0 0.0
          %627 = vmatpush.msra.mxu0 0.0
          %628 = vmatpush.msra.mxu0 0.0
          %629 = vmatpush.msra.mxu0 0.0
          %630 = vmatpush.msra.mxu0 0.0
          %631 = vmatpush.msra.mxu0 0.0
          %632 = vmatpush.msra.mxu0 0.0
          %633 = vmatpush.msra.mxu0 0.0
          %634 = vmatpush.msra.mxu0 %v322
          %635 = vmatpush.msra.mxu0 %v321
          %636 = vmatpush.msra.mxu0 %v320
          %637 = vmatpush.msra.mxu0 %v319
          %638 = vmatmul.f32.gmra.mxu0 %v620
          %v639 = vpop.f32.mrf.mxu0
          %v640 = vadd.f32 0.0, %v639
          %641 = vdwg.mxu0
          %v642 = vadd.f32 %v619, %v640
          %v643 = vxor.u32 %v642, 2147483648
          %v644 = vmul.f32 %v643, 1.442695
          %v645 = vpow.pop %v644
          %v646 = vadd.f32 %v645, 1.0
          %v647 = vrcp.pop %v646
          %v648 = vmul.f32 %v646, %v647
          %v649 = vsub.f32 1.0, %v648
          %v650 = vmul.f32 %v647, %v649
          %v651 = vadd.f32 %v647, %v650
          %vm652 = vweird.f32 %v646
          %vm653 = vweird.f32 %v647
          %vm654 = vmor %vm652, %vm653
          %v655 = vsel %vm654, %v647, %v651
          %v656 = vand.u32 2147483647, %v646
          %vm657 = vcmp.eq.f32.partialorder %v656, 8.507059e+37
          %v658 = vand.u32 %v646, 2147483648
          %v659 = vor.u32 1.1754944e-38, %v658
          %v660 = vsel %vm657, %v659, %v655
          %v661 = vmul.f32 1.0, %v660
          %v662 = vadd.f32 %v640, %v377
          %664 = vrot.lane.b32.xlu0 %v662, 64
          %v665 = vpop.permute.xlu0 %664
          %v667 = vmul.f32 %v661, %v665
          %669 = vrot.lane.b32.xlu0 %v667, 64
          %v670 = vpop.permute.xlu0 %669
          %v672 = vadd.f32 %v619, %v670
          %v673 = vtanh.pop %v672
          %v674 = vsub.f32 1.0, %v661
          %676 = vrot.lane.b32.xlu0 %v673, 96
          %v677 = vpop.permute.xlu0 %676
          %v679 = vmul.f32 %v674, %v677
          %v680 = vmul.f32 %v661, %v611
          %v681 = vadd.f32 %v679, %v680
          %683 = vrot.lane.b32.xlu0 %v681, 96
          %v684 = vpop.permute.xlu0 %683
          %s686 = scalar_lea.vmem %s302, 8 [#allocation9]
          %687 = vst.msk [vmem:[%s686] sm:$0x3] %vm406, %v684
          %s688 = scalar_lea.vmem %s251, 10 [#allocation3]
          %v689 = vld [vmem:[%s688] sm:$0x3]
          %v690 = vsel %vm332, %v684, 0
          %692 = vmatpush.msra.mxu0 0.0
          %693 = vmatpush.msra.mxu0 0.0
          %694 = vmatpush.msra.mxu0 0.0
          %695 = vmatpush.msra.mxu0 0.0
          %696 = vmatpush.msra.mxu0 0.0
          %697 = vmatpush.msra.mxu0 0.0
          %698 = vmatpush.msra.mxu0 0.0
          %699 = vmatpush.msra.mxu0 0.0
          %700 = vmatpush.msra.mxu0 0.0
          %701 = vmatpush.msra.mxu0 0.0
          %702 = vmatpush.msra.mxu0 0.0
          %703 = vmatpush.msra.mxu0 0.0
          %704 = vmatpush.msra.mxu0 %v322
          %705 = vmatpush.msra.mxu0 %v321
          %706 = vmatpush.msra.mxu0 %v320
          %707 = vmatpush.msra.mxu0 %v319
          %708 = vmatmul.f32.gmra.mxu0 %v690
          %v709 = vpop.f32.mrf.mxu0
          %v710 = vadd.f32 0.0, %v709
          %711 = vdwg.mxu0
          %v712 = vadd.f32 %v689, %v710
          %v713 = vxor.u32 %v712, 2147483648
          %v714 = vmul.f32 %v713, 1.442695
          %v715 = vpow.pop %v714
          %v716 = vadd.f32 %v715, 1.0
          %v717 = vrcp.pop %v716
          %v718 = vmul.f32 %v716, %v717
          %v719 = vsub.f32 1.0, %v718
          %v720 = vmul.f32 %v717, %v719
          %v721 = vadd.f32 %v717, %v720
          %vm722 = vweird.f32 %v716
          %vm723 = vweird.f32 %v717
          %vm724 = vmor %vm722, %vm723
          %v725 = vsel %vm724, %v717, %v721
          %v726 = vand.u32 2147483647, %v716
          %vm727 = vcmp.eq.f32.partialorder %v726, 8.507059e+37
          %v728 = vand.u32 %v716, 2147483648
          %v729 = vor.u32 1.1754944e-38, %v728
          %v730 = vsel %vm727, %v729, %v725
          %v731 = vmul.f32 1.0, %v730
          %v732 = vadd.f32 %v710, %v377
          %734 = vrot.lane.b32.xlu0 %v732, 64
          %v735 = vpop.permute.xlu0 %734
          %v737 = vmul.f32 %v731, %v735
          %739 = vrot.lane.b32.xlu0 %v737, 64
          %v740 = vpop.permute.xlu0 %739
          %v742 = vadd.f32 %v689, %v740
          %v743 = vtanh.pop %v742
          %v744 = vsub.f32 1.0, %v731
          %746 = vrot.lane.b32.xlu0 %v743, 96
          %v747 = vpop.permute.xlu0 %746
          %v749 = vmul.f32 %v744, %v747
          %v750 = vmul.f32 %v731, %v681
          %v751 = vadd.f32 %v749, %v750
          %753 = vrot.lane.b32.xlu0 %v751, 96
          %v754 = vpop.permute.xlu0 %753
          %s756 = scalar_lea.vmem %s302, 10 [#allocation9]
          %757 = vst.msk [vmem:[%s756] sm:$0x3] %vm406, %v754
          %s758 = scalar_lea.vmem %s251, 12 [#allocation3]
          %v759 = vld [vmem:[%s758] sm:$0x3]
          %v760 = vsel %vm332, %v754, 0
          %762 = vmatpush.msra.mxu0 0.0
          %763 = vmatpush.msra.mxu0 0.0
          %764 = vmatpush.msra.mxu0 0.0
          %765 = vmatpush.msra.mxu0 0.0
          %766 = vmatpush.msra.mxu0 0.0
          %767 = vmatpush.msra.mxu0 0.0
          %768 = vmatpush.msra.mxu0 0.0
          %769 = vmatpush.msra.mxu0 0.0
          %770 = vmatpush.msra.mxu0 0.0
          %771 = vmatpush.msra.mxu0 0.0
          %772 = vmatpush.msra.mxu0 0.0
          %773 = vmatpush.msra.mxu0 0.0
          %774 = vmatpush.msra.mxu0 %v322
          %775 = vmatpush.msra.mxu0 %v321
          %776 = vmatpush.msra.mxu0 %v320
          %777 = vmatpush.msra.mxu0 %v319
          %778 = vmatmul.f32.gmra.mxu0 %v760
          %v779 = vpop.f32.mrf.mxu0
          %v780 = vadd.f32 0.0, %v779
          %781 = vdwg.mxu0
          %v782 = vadd.f32 %v759, %v780
          %v783 = vxor.u32 %v782, 2147483648
          %v784 = vmul.f32 %v783, 1.442695
          %v785 = vpow.pop %v784
          %v786 = vadd.f32 %v785, 1.0
          %v787 = vrcp.pop %v786
          %v788 = vmul.f32 %v786, %v787
          %v789 = vsub.f32 1.0, %v788
          %v790 = vmul.f32 %v787, %v789
          %v791 = vadd.f32 %v787, %v790
          %vm792 = vweird.f32 %v786
          %vm793 = vweird.f32 %v787
          %vm794 = vmor %vm792, %vm793
          %v795 = vsel %vm794, %v787, %v791
          %v796 = vand.u32 2147483647, %v786
          %vm797 = vcmp.eq.f32.partialorder %v796, 8.507059e+37
          %v798 = vand.u32 %v786, 2147483648
          %v799 = vor.u32 1.1754944e-38, %v798
          %v800 = vsel %vm797, %v799, %v795
          %v801 = vmul.f32 1.0, %v800
          %v802 = vadd.f32 %v780, %v377
          %804 = vrot.lane.b32.xlu0 %v802, 64
          %v805 = vpop.permute.xlu0 %804
          %v807 = vmul.f32 %v801, %v805
          %809 = vrot.lane.b32.xlu0 %v807, 64
          %v810 = vpop.permute.xlu0 %809
          %v812 = vadd.f32 %v759, %v810
          %v813 = vtanh.pop %v812
          %v814 = vsub.f32 1.0, %v801
          %816 = vrot.lane.b32.xlu0 %v813, 96
          %v817 = vpop.permute.xlu0 %816
          %v819 = vmul.f32 %v814, %v817
          %v820 = vmul.f32 %v801, %v751
          %v821 = vadd.f32 %v819, %v820
          %823 = vrot.lane.b32.xlu0 %v821, 96
          %v824 = vpop.permute.xlu0 %823
          %s826 = scalar_lea.vmem %s302, 12 [#allocation9]
          %827 = vst.msk [vmem:[%s826] sm:$0x3] %vm406, %v824
          %s828 = scalar_lea.vmem %s251, 14 [#allocation3]
          %v829 = vld [vmem:[%s828] sm:$0x3]
          %v830 = vsel %vm332, %v824, 0
          %832 = vmatpush.msra.mxu0 0.0
          %833 = vmatpush.msra.mxu0 0.0
          %834 = vmatpush.msra.mxu0 0.0
          %835 = vmatpush.msra.mxu0 0.0
          %836 = vmatpush.msra.mxu0 0.0
          %837 = vmatpush.msra.mxu0 0.0
          %838 = vmatpush.msra.mxu0 0.0
          %839 = vmatpush.msra.mxu0 0.0
          %840 = vmatpush.msra.mxu0 0.0
          %841 = vmatpush.msra.mxu0 0.0
          %842 = vmatpush.msra.mxu0 0.0
          %843 = vmatpush.msra.mxu0 0.0
          %844 = vmatpush.msra.mxu0 %v322
          %845 = vmatpush.msra.mxu0 %v321
          %846 = vmatpush.msra.mxu0 %v320
          %847 = vmatpush.msra.mxu0 %v319
          %848 = vmatmul.f32.gmra.mxu0 %v830
          %v849 = vpop.f32.mrf.mxu0
          %v850 = vadd.f32 0.0, %v849
          %851 = vdwg.mxu0
          %v852 = vadd.f32 %v829, %v850
          %v853 = vxor.u32 %v852, 2147483648
          %v854 = vmul.f32 %v853, 1.442695
          %v855 = vpow.pop %v854
          %v856 = vadd.f32 %v855, 1.0
          %v857 = vrcp.pop %v856
          %v858 = vmul.f32 %v856, %v857
          %v859 = vsub.f32 1.0, %v858
          %v860 = vmul.f32 %v857, %v859
          %v861 = vadd.f32 %v857, %v860
          %vm862 = vweird.f32 %v856
          %vm863 = vweird.f32 %v857
          %vm864 = vmor %vm862, %vm863
          %v865 = vsel %vm864, %v857, %v861
          %v866 = vand.u32 2147483647, %v856
          %vm867 = vcmp.eq.f32.partialorder %v866, 8.507059e+37
          %v868 = vand.u32 %v856, 2147483648
          %v869 = vor.u32 1.1754944e-38, %v868
          %v870 = vsel %vm867, %v869, %v865
          %v871 = vmul.f32 1.0, %v870
          %v872 = vadd.f32 %v850, %v377
          %874 = vrot.lane.b32.xlu0 %v872, 64
          %v875 = vpop.permute.xlu0 %874
          %v877 = vmul.f32 %v871, %v875
          %879 = vrot.lane.b32.xlu0 %v877, 64
          %v880 = vpop.permute.xlu0 %879
          %v882 = vadd.f32 %v829, %v880
          %v883 = vtanh.pop %v882
          %v884 = vsub.f32 1.0, %v871
          %886 = vrot.lane.b32.xlu0 %v883, 96
          %v887 = vpop.permute.xlu0 %886
          %v889 = vmul.f32 %v884, %v887
          %v890 = vmul.f32 %v871, %v821
          %v891 = vadd.f32 %v889, %v890
          %893 = vrot.lane.b32.xlu0 %v891, 96
          %v894 = vpop.permute.xlu0 %893
          %s896 = scalar_lea.vmem %s302, 14 [#allocation9]
          %897 = vst.msk [vmem:[%s896] sm:$0x3] %vm406, %v894
          %898 = vst.msk [vmem:[#allocation2] sm:$0x3] %vm406, %v894
        $region52: #{tpu_custom_call.1} parent=31 // pred_fallthru
          _
        %p899 = scmp.eq.s32.totalorder %s27, 1
        // Predicated region
        $region53: #{tpu_custom_call.1} parent=31 // pred_check
          %p900 = pneg %p899
        $region54: #{tpu_custom_call.1} parent=31 // pred_check_branch
          %902 = sbr.rel (%p900) target = $region56
        $region55: #{tpu_custom_call.1} parent=31 // pred_region
          %v903 = vld [vmem:[#allocation2] sm:$0x3]
          %s904 = scalar_lea.vmem %s251, 14 [#allocation3]
          %v905 = vld [vmem:[%s904] sm:$0x3]
          %vm906 = vcmask 261120
          %v908 = vsel %vm906, %v903, 0
          %910 = vmatpush.msra.mxu0 0.0
          %911 = vmatpush.msra.mxu0 0.0
          %912 = vmatpush.msra.mxu0 0.0
          %913 = vmatpush.msra.mxu0 0.0
          %914 = vmatpush.msra.mxu0 0.0
          %915 = vmatpush.msra.mxu0 0.0
          %916 = vmatpush.msra.mxu0 0.0
          %917 = vmatpush.msra.mxu0 0.0
          %918 = vmatpush.msra.mxu0 0.0
          %919 = vmatpush.msra.mxu0 0.0
          %920 = vmatpush.msra.mxu0 0.0
          %921 = vmatpush.msra.mxu0 0.0
          %922 = vmatpush.msra.mxu0 %v322
          %923 = vmatpush.msra.mxu0 %v321
          %924 = vmatpush.msra.mxu0 %v320
          %925 = vmatpush.msra.mxu0 %v319
          %926 = vmatmul.f32.gmra.mxu0 %v908
          %v927 = vpop.f32.mrf.mxu0
          %v928 = vadd.f32 0.0, %v927
          %929 = vdwg.mxu0
          %v930 = vadd.f32 %v905, %v928
          %v931 = vxor.u32 %v930, 2147483648
          %v932 = vmul.f32 %v931, 1.442695
          %v933 = vpow.pop %v932
          %v934 = vadd.f32 %v933, 1.0
          %v935 = vrcp.pop %v934
          %v936 = vmul.f32 %v934, %v935
          %v937 = vsub.f32 1.0, %v936
          %v938 = vmul.f32 %v935, %v937
          %v939 = vadd.f32 %v935, %v938
          %vm940 = vweird.f32 %v934
          %vm941 = vweird.f32 %v935
          %vm942 = vmor %vm940, %vm941
          %v943 = vsel %vm942, %v935, %v939
          %v944 = vand.u32 2147483647, %v934
          %vm945 = vcmp.eq.f32.partialorder %v944, 8.507059e+37
          %v946 = vand.u32 %v934, 2147483648
          %v947 = vor.u32 1.1754944e-38, %v946
          %v948 = vsel %vm945, %v947, %v943
          %v949 = vmul.f32 1.0, %v948
          %950 = vrot.lane.b32.xlu0 %v325, 64
          %v951 = vpop.permute.xlu0 %950
          %v953 = vadd.f32 %v928, %v951
          %955 = vrot.lane.b32.xlu0 %v953, 64
          %v956 = vpop.permute.xlu0 %955
          %v958 = vmul.f32 %v949, %v956
          %960 = vrot.lane.b32.xlu0 %v958, 64
          %v961 = vpop.permute.xlu0 %960
          %v963 = vadd.f32 %v905, %v961
          %v964 = vtanh.pop %v963
          %v965 = vsub.f32 1.0, %v949
          %967 = vrot.lane.b32.xlu0 %v964, 96
          %v968 = vpop.permute.xlu0 %967
          %v970 = vmul.f32 %v965, %v968
          %971 = vrot.lane.b32.xlu0 %v903, 32
          %v972 = vpop.permute.xlu0 %971
          %v974 = vmul.f32 %v949, %v972
          %v975 = vadd.f32 %v970, %v974
          %977 = vrot.lane.b32.xlu0 %v975, 96
          %v978 = vpop.permute.xlu0 %977
          %s980 = scalar_lea.vmem %s302, 14 [#allocation9]
          %vm981 = vcmask 254976
          %982 = vst.msk [vmem:[%s980] sm:$0x3] %vm981, %v978
          %s983 = scalar_lea.vmem %s251, 12 [#allocation3]
          %v984 = vld [vmem:[%s983] sm:$0x3]
          %v985 = vsel %vm906, %v978, 0
          %987 = vmatpush.msra.mxu0 0.0
          %988 = vmatpush.msra.mxu0 0.0
          %989 = vmatpush.msra.mxu0 0.0
          %990 = vmatpush.msra.mxu0 0.0
          %991 = vmatpush.msra.mxu0 0.0
          %992 = vmatpush.msra.mxu0 0.0
          %993 = vmatpush.msra.mxu0 0.0
          %994 = vmatpush.msra.mxu0 0.0
          %995 = vmatpush.msra.mxu0 0.0
          %996 = vmatpush.msra.mxu0 0.0
          %997 = vmatpush.msra.mxu0 0.0
          %998 = vmatpush.msra.mxu0 0.0
          %999 = vmatpush.msra.mxu0 %v322
          %1000 = vmatpush.msra.mxu0 %v321
          %1001 = vmatpush.msra.mxu0 %v320
          %1002 = vmatpush.msra.mxu0 %v319
          %1003 = vmatmul.f32.gmra.mxu0 %v985
          %v1004 = vpop.f32.mrf.mxu0
          %v1005 = vadd.f32 0.0, %v1004
          %1006 = vdwg.mxu0
          %v1007 = vadd.f32 %v984, %v1005
          %v1008 = vxor.u32 %v1007, 2147483648
          %v1009 = vmul.f32 %v1008, 1.442695
          %v1010 = vpow.pop %v1009
          %v1011 = vadd.f32 %v1010, 1.0
          %v1012 = vrcp.pop %v1011
          %v1013 = vmul.f32 %v1011, %v1012
          %v1014 = vsub.f32 1.0, %v1013
          %v1015 = vmul.f32 %v1012, %v1014
          %v1016 = vadd.f32 %v1012, %v1015
          %vm1017 = vweird.f32 %v1011
          %vm1018 = vweird.f32 %v1012
          %vm1019 = vmor %vm1017, %vm1018
          %v1020 = vsel %vm1019, %v1012, %v1016
          %v1021 = vand.u32 2147483647, %v1011
          %vm1022 = vcmp.eq.f32.partialorder %v1021, 8.507059e+37
          %v1023 = vand.u32 %v1011, 2147483648
          %v1024 = vor.u32 1.1754944e-38, %v1023
          %v1025 = vsel %vm1022, %v1024, %v1020
          %v1026 = vmul.f32 1.0, %v1025
          %v1027 = vadd.f32 %v1005, %v951
          %1029 = vrot.lane.b32.xlu0 %v1027, 64
          %v1030 = vpop.permute.xlu0 %1029
          %v1032 = vmul.f32 %v1026, %v1030
          %1034 = vrot.lane.b32.xlu0 %v1032, 64
          %v1035 = vpop.permute.xlu0 %1034
          %v1037 = vadd.f32 %v984, %v1035
          %v1038 = vtanh.pop %v1037
          %v1039 = vsub.f32 1.0, %v1026
          %1041 = vrot.lane.b32.xlu0 %v1038, 96
          %v1042 = vpop.permute.xlu0 %1041
          %v1044 = vmul.f32 %v1039, %v1042
          %v1045 = vmul.f32 %v1026, %v975
          %v1046 = vadd.f32 %v1044, %v1045
          %1048 = vrot.lane.b32.xlu0 %v1046, 96
          %v1049 = vpop.permute.xlu0 %1048
          %s1051 = scalar_lea.vmem %s302, 12 [#allocation9]
          %1052 = vst.msk [vmem:[%s1051] sm:$0x3] %vm981, %v1049
          %s1053 = scalar_lea.vmem %s251, 10 [#allocation3]
          %v1054 = vld [vmem:[%s1053] sm:$0x3]
          %v1055 = vsel %vm906, %v1049, 0
          %1057 = vmatpush.msra.mxu0 0.0
          %1058 = vmatpush.msra.mxu0 0.0
          %1059 = vmatpush.msra.mxu0 0.0
          %1060 = vmatpush.msra.mxu0 0.0
          %1061 = vmatpush.msra.mxu0 0.0
          %1062 = vmatpush.msra.mxu0 0.0
          %1063 = vmatpush.msra.mxu0 0.0
          %1064 = vmatpush.msra.mxu0 0.0
          %1065 = vmatpush.msra.mxu0 0.0
          %1066 = vmatpush.msra.mxu0 0.0
          %1067 = vmatpush.msra.mxu0 0.0
          %1068 = vmatpush.msra.mxu0 0.0
          %1069 = vmatpush.msra.mxu0 %v322
          %1070 = vmatpush.msra.mxu0 %v321
          %1071 = vmatpush.msra.mxu0 %v320
          %1072 = vmatpush.msra.mxu0 %v319
          %1073 = vmatmul.f32.gmra.mxu0 %v1055
          %v1074 = vpop.f32.mrf.mxu0
          %v1075 = vadd.f32 0.0, %v1074
          %1076 = vdwg.mxu0
          %v1077 = vadd.f32 %v1054, %v1075
          %v1078 = vxor.u32 %v1077, 2147483648
          %v1079 = vmul.f32 %v1078, 1.442695
          %v1080 = vpow.pop %v1079
          %v1081 = vadd.f32 %v1080, 1.0
          %v1082 = vrcp.pop %v1081
          %v1083 = vmul.f32 %v1081, %v1082
          %v1084 = vsub.f32 1.0, %v1083
          %v1085 = vmul.f32 %v1082, %v1084
          %v1086 = vadd.f32 %v1082, %v1085
          %vm1087 = vweird.f32 %v1081
          %vm1088 = vweird.f32 %v1082
          %vm1089 = vmor %vm1087, %vm1088
          %v1090 = vsel %vm1089, %v1082, %v1086
          %v1091 = vand.u32 2147483647, %v1081
          %vm1092 = vcmp.eq.f32.partialorder %v1091, 8.507059e+37
          %v1093 = vand.u32 %v1081, 2147483648
          %v1094 = vor.u32 1.1754944e-38, %v1093
          %v1095 = vsel %vm1092, %v1094, %v1090
          %v1096 = vmul.f32 1.0, %v1095
          %v1097 = vadd.f32 %v1075, %v951
          %1099 = vrot.lane.b32.xlu0 %v1097, 64
          %v1100 = vpop.permute.xlu0 %1099
          %v1102 = vmul.f32 %v1096, %v1100
          %1104 = vrot.lane.b32.xlu0 %v1102, 64
          %v1105 = vpop.permute.xlu0 %1104
          %v1107 = vadd.f32 %v1054, %v1105
          %v1108 = vtanh.pop %v1107
          %v1109 = vsub.f32 1.0, %v1096
          %1111 = vrot.lane.b32.xlu0 %v1108, 96
          %v1112 = vpop.permute.xlu0 %1111
          %v1114 = vmul.f32 %v1109, %v1112
          %v1115 = vmul.f32 %v1096, %v1046
          %v1116 = vadd.f32 %v1114, %v1115
          %1118 = vrot.lane.b32.xlu0 %v1116, 96
          %v1119 = vpop.permute.xlu0 %1118
          %s1121 = scalar_lea.vmem %s302, 10 [#allocation9]
          %1122 = vst.msk [vmem:[%s1121] sm:$0x3] %vm981, %v1119
          %s1123 = scalar_lea.vmem %s251, 8 [#allocation3]
          %v1124 = vld [vmem:[%s1123] sm:$0x3]
          %v1125 = vsel %vm906, %v1119, 0
          %1127 = vmatpush.msra.mxu0 0.0
          %1128 = vmatpush.msra.mxu0 0.0
          %1129 = vmatpush.msra.mxu0 0.0
          %1130 = vmatpush.msra.mxu0 0.0
          %1131 = vmatpush.msra.mxu0 0.0
          %1132 = vmatpush.msra.mxu0 0.0
          %1133 = vmatpush.msra.mxu0 0.0
          %1134 = vmatpush.msra.mxu0 0.0
          %1135 = vmatpush.msra.mxu0 0.0
          %1136 = vmatpush.msra.mxu0 0.0
          %1137 = vmatpush.msra.mxu0 0.0
          %1138 = vmatpush.msra.mxu0 0.0
          %1139 = vmatpush.msra.mxu0 %v322
          %1140 = vmatpush.msra.mxu0 %v321
          %1141 = vmatpush.msra.mxu0 %v320
          %1142 = vmatpush.msra.mxu0 %v319
          %1143 = vmatmul.f32.gmra.mxu0 %v1125
          %v1144 = vpop.f32.mrf.mxu0
          %v1145 = vadd.f32 0.0, %v1144
          %1146 = vdwg.mxu0
          %v1147 = vadd.f32 %v1124, %v1145
          %v1148 = vxor.u32 %v1147, 2147483648
          %v1149 = vmul.f32 %v1148, 1.442695
          %v1150 = vpow.pop %v1149
          %v1151 = vadd.f32 %v1150, 1.0
          %v1152 = vrcp.pop %v1151
          %v1153 = vmul.f32 %v1151, %v1152
          %v1154 = vsub.f32 1.0, %v1153
          %v1155 = vmul.f32 %v1152, %v1154
          %v1156 = vadd.f32 %v1152, %v1155
          %vm1157 = vweird.f32 %v1151
          %vm1158 = vweird.f32 %v1152
          %vm1159 = vmor %vm1157, %vm1158
          %v1160 = vsel %vm1159, %v1152, %v1156
          %v1161 = vand.u32 2147483647, %v1151
          %vm1162 = vcmp.eq.f32.partialorder %v1161, 8.507059e+37
          %v1163 = vand.u32 %v1151, 2147483648
          %v1164 = vor.u32 1.1754944e-38, %v1163
          %v1165 = vsel %vm1162, %v1164, %v1160
          %v1166 = vmul.f32 1.0, %v1165
          %v1167 = vadd.f32 %v1145, %v951
          %1169 = vrot.lane.b32.xlu0 %v1167, 64
          %v1170 = vpop.permute.xlu0 %1169
          %v1172 = vmul.f32 %v1166, %v1170
          %1174 = vrot.lane.b32.xlu0 %v1172, 64
          %v1175 = vpop.permute.xlu0 %1174
          %v1177 = vadd.f32 %v1124, %v1175
          %v1178 = vtanh.pop %v1177
          %v1179 = vsub.f32 1.0, %v1166
          %1181 = vrot.lane.b32.xlu0 %v1178, 96
          %v1182 = vpop.permute.xlu0 %1181
          %v1184 = vmul.f32 %v1179, %v1182
          %v1185 = vmul.f32 %v1166, %v1116
          %v1186 = vadd.f32 %v1184, %v1185
          %1188 = vrot.lane.b32.xlu0 %v1186, 96
          %v1189 = vpop.permute.xlu0 %1188
          %s1191 = scalar_lea.vmem %s302, 8 [#allocation9]
          %1192 = vst.msk [vmem:[%s1191] sm:$0x3] %vm981, %v1189
          %s1193 = scalar_lea.vmem %s251, 6 [#allocation3]
          %v1194 = vld [vmem:[%s1193] sm:$0x3]
          %v1195 = vsel %vm906, %v1189, 0
          %1197 = vmatpush.msra.mxu0 0.0
          %1198 = vmatpush.msra.mxu0 0.0
          %1199 = vmatpush.msra.mxu0 0.0
          %1200 = vmatpush.msra.mxu0 0.0
          %1201 = vmatpush.msra.mxu0 0.0
          %1202 = vmatpush.msra.mxu0 0.0
          %1203 = vmatpush.msra.mxu0 0.0
          %1204 = vmatpush.msra.mxu0 0.0
          %1205 = vmatpush.msra.mxu0 0.0
          %1206 = vmatpush.msra.mxu0 0.0
          %1207 = vmatpush.msra.mxu0 0.0
          %1208 = vmatpush.msra.mxu0 0.0
          %1209 = vmatpush.msra.mxu0 %v322
          %1210 = vmatpush.msra.mxu0 %v321
          %1211 = vmatpush.msra.mxu0 %v320
          %1212 = vmatpush.msra.mxu0 %v319
          %1213 = vmatmul.f32.gmra.mxu0 %v1195
          %v1214 = vpop.f32.mrf.mxu0
          %v1215 = vadd.f32 0.0, %v1214
          %1216 = vdwg.mxu0
          %v1217 = vadd.f32 %v1194, %v1215
          %v1218 = vxor.u32 %v1217, 2147483648
          %v1219 = vmul.f32 %v1218, 1.442695
          %v1220 = vpow.pop %v1219
          %v1221 = vadd.f32 %v1220, 1.0
          %v1222 = vrcp.pop %v1221
          %v1223 = vmul.f32 %v1221, %v1222
          %v1224 = vsub.f32 1.0, %v1223
          %v1225 = vmul.f32 %v1222, %v1224
          %v1226 = vadd.f32 %v1222, %v1225
          %vm1227 = vweird.f32 %v1221
          %vm1228 = vweird.f32 %v1222
          %vm1229 = vmor %vm1227, %vm1228
          %v1230 = vsel %vm1229, %v1222, %v1226
          %v1231 = vand.u32 2147483647, %v1221
          %vm1232 = vcmp.eq.f32.partialorder %v1231, 8.507059e+37
          %v1233 = vand.u32 %v1221, 2147483648
          %v1234 = vor.u32 1.1754944e-38, %v1233
          %v1235 = vsel %vm1232, %v1234, %v1230
          %v1236 = vmul.f32 1.0, %v1235
          %v1237 = vadd.f32 %v1215, %v951
          %1239 = vrot.lane.b32.xlu0 %v1237, 64
          %v1240 = vpop.permute.xlu0 %1239
          %v1242 = vmul.f32 %v1236, %v1240
          %1244 = vrot.lane.b32.xlu0 %v1242, 64
          %v1245 = vpop.permute.xlu0 %1244
          %v1247 = vadd.f32 %v1194, %v1245
          %v1248 = vtanh.pop %v1247
          %v1249 = vsub.f32 1.0, %v1236
          %1251 = vrot.lane.b32.xlu0 %v1248, 96
          %v1252 = vpop.permute.xlu0 %1251
          %v1254 = vmul.f32 %v1249, %v1252
          %v1255 = vmul.f32 %v1236, %v1186
          %v1256 = vadd.f32 %v1254, %v1255
          %1258 = vrot.lane.b32.xlu0 %v1256, 96
          %v1259 = vpop.permute.xlu0 %1258
          %s1261 = scalar_lea.vmem %s302, 6 [#allocation9]
          %1262 = vst.msk [vmem:[%s1261] sm:$0x3] %vm981, %v1259
          %s1263 = scalar_lea.vmem %s251, 4 [#allocation3]
          %v1264 = vld [vmem:[%s1263] sm:$0x3]
          %v1265 = vsel %vm906, %v1259, 0
          %1267 = vmatpush.msra.mxu0 0.0
          %1268 = vmatpush.msra.mxu0 0.0
          %1269 = vmatpush.msra.mxu0 0.0
          %1270 = vmatpush.msra.mxu0 0.0
          %1271 = vmatpush.msra.mxu0 0.0
          %1272 = vmatpush.msra.mxu0 0.0
          %1273 = vmatpush.msra.mxu0 0.0
          %1274 = vmatpush.msra.mxu0 0.0
          %1275 = vmatpush.msra.mxu0 0.0
          %1276 = vmatpush.msra.mxu0 0.0
          %1277 = vmatpush.msra.mxu0 0.0
          %1278 = vmatpush.msra.mxu0 0.0
          %1279 = vmatpush.msra.mxu0 %v322
          %1280 = vmatpush.msra.mxu0 %v321
          %1281 = vmatpush.msra.mxu0 %v320
          %1282 = vmatpush.msra.mxu0 %v319
          %1283 = vmatmul.f32.gmra.mxu0 %v1265
          %v1284 = vpop.f32.mrf.mxu0
          %v1285 = vadd.f32 0.0, %v1284
          %1286 = vdwg.mxu0
          %v1287 = vadd.f32 %v1264, %v1285
          %v1288 = vxor.u32 %v1287, 2147483648
          %v1289 = vmul.f32 %v1288, 1.442695
          %v1290 = vpow.pop %v1289
          %v1291 = vadd.f32 %v1290, 1.0
          %v1292 = vrcp.pop %v1291
          %v1293 = vmul.f32 %v1291, %v1292
          %v1294 = vsub.f32 1.0, %v1293
          %v1295 = vmul.f32 %v1292, %v1294
          %v1296 = vadd.f32 %v1292, %v1295
          %vm1297 = vweird.f32 %v1291
          %vm1298 = vweird.f32 %v1292
          %vm1299 = vmor %vm1297, %vm1298
          %v1300 = vsel %vm1299, %v1292, %v1296
          %v1301 = vand.u32 2147483647, %v1291
          %vm1302 = vcmp.eq.f32.partialorder %v1301, 8.507059e+37
          %v1303 = vand.u32 %v1291, 2147483648
          %v1304 = vor.u32 1.1754944e-38, %v1303
          %v1305 = vsel %vm1302, %v1304, %v1300
          %v1306 = vmul.f32 1.0, %v1305
          %v1307 = vadd.f32 %v1285, %v951
          %1309 = vrot.lane.b32.xlu0 %v1307, 64
          %v1310 = vpop.permute.xlu0 %1309
          %v1312 = vmul.f32 %v1306, %v1310
          %1314 = vrot.lane.b32.xlu0 %v1312, 64
          %v1315 = vpop.permute.xlu0 %1314
          %v1317 = vadd.f32 %v1264, %v1315
          %v1318 = vtanh.pop %v1317
          %v1319 = vsub.f32 1.0, %v1306
          %1321 = vrot.lane.b32.xlu0 %v1318, 96
          %v1322 = vpop.permute.xlu0 %1321
          %v1324 = vmul.f32 %v1319, %v1322
          %v1325 = vmul.f32 %v1306, %v1256
          %v1326 = vadd.f32 %v1324, %v1325
          %1328 = vrot.lane.b32.xlu0 %v1326, 96
          %v1329 = vpop.permute.xlu0 %1328
          %s1331 = scalar_lea.vmem %s302, 4 [#allocation9]
          %1332 = vst.msk [vmem:[%s1331] sm:$0x3] %vm981, %v1329
          %s1333 = scalar_lea.vmem %s251, 2 [#allocation3]
          %v1334 = vld [vmem:[%s1333] sm:$0x3]
          %v1335 = vsel %vm906, %v1329, 0
          %1337 = vmatpush.msra.mxu0 0.0
          %1338 = vmatpush.msra.mxu0 0.0
          %1339 = vmatpush.msra.mxu0 0.0
          %1340 = vmatpush.msra.mxu0 0.0
          %1341 = vmatpush.msra.mxu0 0.0
          %1342 = vmatpush.msra.mxu0 0.0
          %1343 = vmatpush.msra.mxu0 0.0
          %1344 = vmatpush.msra.mxu0 0.0
          %1345 = vmatpush.msra.mxu0 0.0
          %1346 = vmatpush.msra.mxu0 0.0
          %1347 = vmatpush.msra.mxu0 0.0
          %1348 = vmatpush.msra.mxu0 0.0
          %1349 = vmatpush.msra.mxu0 %v322
          %1350 = vmatpush.msra.mxu0 %v321
          %1351 = vmatpush.msra.mxu0 %v320
          %1352 = vmatpush.msra.mxu0 %v319
          %1353 = vmatmul.f32.gmra.mxu0 %v1335
          %v1354 = vpop.f32.mrf.mxu0
          %v1355 = vadd.f32 0.0, %v1354
          %1356 = vdwg.mxu0
          %v1357 = vadd.f32 %v1334, %v1355
          %v1358 = vxor.u32 %v1357, 2147483648
          %v1359 = vmul.f32 %v1358, 1.442695
          %v1360 = vpow.pop %v1359
          %v1361 = vadd.f32 %v1360, 1.0
          %v1362 = vrcp.pop %v1361
          %v1363 = vmul.f32 %v1361, %v1362
          %v1364 = vsub.f32 1.0, %v1363
          %v1365 = vmul.f32 %v1362, %v1364
          %v1366 = vadd.f32 %v1362, %v1365
          %vm1367 = vweird.f32 %v1361
          %vm1368 = vweird.f32 %v1362
          %vm1369 = vmor %vm1367, %vm1368
          %v1370 = vsel %vm1369, %v1362, %v1366
          %v1371 = vand.u32 2147483647, %v1361
          %vm1372 = vcmp.eq.f32.partialorder %v1371, 8.507059e+37
          %v1373 = vand.u32 %v1361, 2147483648
          %v1374 = vor.u32 1.1754944e-38, %v1373
          %v1375 = vsel %vm1372, %v1374, %v1370
          %v1376 = vmul.f32 1.0, %v1375
          %v1377 = vadd.f32 %v1355, %v951
          %1379 = vrot.lane.b32.xlu0 %v1377, 64
          %v1380 = vpop.permute.xlu0 %1379
          %v1382 = vmul.f32 %v1376, %v1380
          %1384 = vrot.lane.b32.xlu0 %v1382, 64
          %v1385 = vpop.permute.xlu0 %1384
          %v1387 = vadd.f32 %v1334, %v1385
          %v1388 = vtanh.pop %v1387
          %v1389 = vsub.f32 1.0, %v1376
          %1391 = vrot.lane.b32.xlu0 %v1388, 96
          %v1392 = vpop.permute.xlu0 %1391
          %v1394 = vmul.f32 %v1389, %v1392
          %v1395 = vmul.f32 %v1376, %v1326
          %v1396 = vadd.f32 %v1394, %v1395
          %1398 = vrot.lane.b32.xlu0 %v1396, 96
          %v1399 = vpop.permute.xlu0 %1398
          %s1401 = scalar_lea.vmem %s302, 2 [#allocation9]
          %1402 = vst.msk [vmem:[%s1401] sm:$0x3] %vm981, %v1399
          %v1403 = vld [vmem:[%s251] sm:$0x3]
          %v1404 = vsel %vm906, %v1399, 0
          %1406 = vmatpush.msra.mxu0 0.0
          %1407 = vmatpush.msra.mxu0 0.0
          %1408 = vmatpush.msra.mxu0 0.0
          %1409 = vmatpush.msra.mxu0 0.0
          %1410 = vmatpush.msra.mxu0 0.0
          %1411 = vmatpush.msra.mxu0 0.0
          %1412 = vmatpush.msra.mxu0 0.0
          %1413 = vmatpush.msra.mxu0 0.0
          %1414 = vmatpush.msra.mxu0 0.0
          %1415 = vmatpush.msra.mxu0 0.0
          %1416 = vmatpush.msra.mxu0 0.0
          %1417 = vmatpush.msra.mxu0 0.0
          %1418 = vmatpush.msra.mxu0 %v322
          %1419 = vmatpush.msra.mxu0 %v321
          %1420 = vmatpush.msra.mxu0 %v320
          %1421 = vmatpush.msra.mxu0 %v319
          %1422 = vmatmul.f32.gmra.mxu0 %v1404
          %v1423 = vpop.f32.mrf.mxu0
          %v1424 = vadd.f32 0.0, %v1423
          %1425 = vdwg.mxu0
          %v1426 = vadd.f32 %v1403, %v1424
          %v1427 = vxor.u32 %v1426, 2147483648
          %v1428 = vmul.f32 %v1427, 1.442695
          %v1429 = vpow.pop %v1428
          %v1430 = vadd.f32 %v1429, 1.0
          %v1431 = vrcp.pop %v1430
          %v1432 = vmul.f32 %v1430, %v1431
          %v1433 = vsub.f32 1.0, %v1432
          %v1434 = vmul.f32 %v1431, %v1433
          %v1435 = vadd.f32 %v1431, %v1434
          %vm1436 = vweird.f32 %v1430
          %vm1437 = vweird.f32 %v1431
          %vm1438 = vmor %vm1436, %vm1437
          %v1439 = vsel %vm1438, %v1431, %v1435
          %v1440 = vand.u32 2147483647, %v1430
          %vm1441 = vcmp.eq.f32.partialorder %v1440, 8.507059e+37
          %v1442 = vand.u32 %v1430, 2147483648
          %v1443 = vor.u32 1.1754944e-38, %v1442
          %v1444 = vsel %vm1441, %v1443, %v1439
          %v1445 = vmul.f32 1.0, %v1444
          %v1446 = vadd.f32 %v1424, %v951
          %1448 = vrot.lane.b32.xlu0 %v1446, 64
          %v1449 = vpop.permute.xlu0 %1448
          %v1451 = vmul.f32 %v1445, %v1449
          %1453 = vrot.lane.b32.xlu0 %v1451, 64
          %v1454 = vpop.permute.xlu0 %1453
          %v1456 = vadd.f32 %v1403, %v1454
          %v1457 = vtanh.pop %v1456
          %v1458 = vsub.f32 1.0, %v1445
          %1460 = vrot.lane.b32.xlu0 %v1457, 96
          %v1461 = vpop.permute.xlu0 %1460
          %v1463 = vmul.f32 %v1458, %v1461
          %v1464 = vmul.f32 %v1445, %v1396
          %v1465 = vadd.f32 %v1463, %v1464
          %1467 = vrot.lane.b32.xlu0 %v1465, 96
          %v1468 = vpop.permute.xlu0 %1467
          %1470 = vst.msk [vmem:[%s302] sm:$0x3] %vm981, %v1468
          %1471 = vst.msk [vmem:[#allocation2] sm:$0x3] %vm981, %v1468
        $region56: #{tpu_custom_call.1} parent=31 // pred_fallthru
          _
        %s1472 = sand.u32 %s141, 1
        %s1473 = scalar_lea.sflag [#allocation5], %s1472
        %s1474 = sand.u32 %s141, 1
        %s1475 = smul.addr %s1474, 16
        %s1476 = scalar_lea.vmem [#allocation9], %s1475
        // Predicated region
        $region57: #{tpu_custom_call.1} parent=31 // pred_check
          %p1477 = pneg %p151
        $region58: #{tpu_custom_call.1} parent=31 // pred_check_branch
          %1479 = sbr.rel (%p1477) target = $region60
        $region59: #{tpu_custom_call.1} parent=31 // pred_region
          %s1480 = smul.u32 %s28, 2
          %s1481 = ssub.s32 0, %s1480
          %s1482 = smul.u32 %s27, %s1481
          %s1483 = sadd.s32 %s28, %s1482
          %s1484 = smul.u32 8, %s1483
          %1486 = vsyncadd %s1473, 0
          %s1487 = smul.addr %s27, 8
          %s1488 = sadd.s32 %s1484, %s1487
          %s1489 = smul.addr %s1488, 2
          %s1490 = scalar_lea.hbm %s3, %s1489
          %s1491 = sshll.u32 %s1476, 4
          %s1492 = int_to_ptr.vmem [resolvable:$true] %s1491
          %s1493 = sshll.u32 %s1490, 4
          %s1494 = int_to_ptr.hbm [resolvable:$true] %s1493
          %1499 = dma.vmem_to_hbm [thread:$0]  %s1492, 256, %s1494, %s1473, 32, 32, 2
        $region60: #{tpu_custom_call.1} parent=31 // pred_fallthru
          _
      $region32: #{tpu_custom_call.1} parent=5 // pred_fallthru
        _
      %p1500 = scmp.le.s32.totalorder 2, %s18
      // Predicated region
      $region61: #{tpu_custom_call.1} parent=5 // pred_check
        %p1501 = pneg %p1500
      $region62: #{tpu_custom_call.1} parent=5 // pred_check_branch
        %1503 = sbr.rel (%p1501) target = $region64
      $region63: #{tpu_custom_call.1} parent=5 // pred_region
        %s1504 = ssub.s32 %s18, 2
        // Predicated region
        $region65: #{tpu_custom_call.1} parent=63 // pred_check
          %p1505 = pneg %p157
        $region66: #{tpu_custom_call.1} parent=63 // pred_check_branch
          %1507 = sbr.rel (%p1505) target = $region68
        $region67: #{tpu_custom_call.1} parent=63 // pred_region
          %s1508 = sand.u32 %s142, 1
          %s1509 = scalar_lea.sflag [#allocation5], %s1508
          %s1510 = sand.u32 %s142, 1
          %s1511 = smul.addr %s1510, 16
          %s1512 = scalar_lea.vmem [#allocation9], %s1511
          %1514 = dma.done %s1509, 256
        $region68: #{tpu_custom_call.1} parent=63 // pred_fallthru
          _
      $region64: #{tpu_custom_call.1} parent=5 // pred_fallthru
        _
    $region6: #{tpu_custom_call.1} parent=1 // loop_footer
      %s22 = sadd.s32 1, %s18
    $region7: #{tpu_custom_call.1} parent=1 // loop_footer_branch
      %17 = sbr.rel target = $region3
    $region8: #{tpu_custom_call.1} parent=1 // loop_exit
      _
    %1515 = vsyncpa [#allocation4], 1
    %s1516 = scalar_lea.sflag [#allocation4], 1
    %1517 = vsyncpa %s1516, 1
    %1518 = vsyncpa [#allocation7], 1
    %s1519 = scalar_lea.sflag [#allocation7], 1
    %1520 = vsyncpa %s1519, 1
    %1521 = vsyncpa [#allocation5], 1
    %s1522 = scalar_lea.sflag [#allocation5], 1
    %1523 = vsyncpa %s1522, 1

</llo_original>
